<compile_context>
chip_gen: v6e
topology: v6e:2x2x1
jax: 0.10.0
libtpu: 0.0.40
codegen_flags: <defaults>
</compile_context>

<pallas_src>
import functools

import jax
import jax.numpy as jnp
from jax.experimental import pallas as pl
from jax.experimental.pallas import tpu as pltpu

KH = KW = 7
STRIDE = (2, 1)
PADDING = (3, 2)
DILATION = (2, 1)
CIN, COUT = 3, 32
KDIM = KH * KW * CIN          # 147
TH = 8                        # output rows computed per grid step


def _conv_tanh_kernel(x_ref, w_ref, b_ref, o_ref, *, wout):
    """x_ref: (1, 3*He_pad, Wp) bf16 resident slab of the current sample.
       w_ref: (COUT, 147) bf16, K ordered (kw, kh, ci).
       b_ref: (COUT, 1) f32.
       o_ref: (1, TH, COUT, wout) f32 output tile."""
    rb = pl.program_id(1)
    # Slab rows feeding output rows [rb*TH, rb*TH + TH): row 3*(ho + kh) + ci,
    # i.e. 3*(TH + 6) consecutive rows starting at 3*TH*rb (8-aligned).
    start = pl.multiple_of(3 * TH * rb, 8)
    rows = x_ref[0, pl.ds(start, 3 * (TH + 6)), :].astype(jnp.float32)
    w = w_ref[...]                                 # (COUT, 147) bf16, resident
    b = b_ref[...]                                 # (COUT, 1) f32

    for ho in range(TH):                           # static unroll
        r0 = 3 * ho
        # (147, wout) patch matrix for this output row: the 21 (kh, ci) slab
        # rows, lane-shifted by kw = 0..6 and stacked along sublanes.
        rhs = jnp.concatenate(
            [rows[r0:r0 + 3 * KH, kw:kw + wout] for kw in range(KW)], axis=0)
        acc = jnp.dot(w, rhs.astype(jnp.bfloat16),
                      preferred_element_type=jnp.float32)    # (COUT, wout) f32
        o_ref[0, ho] = jnp.tanh(acc + b)


def model_tanh_forward(x_nchw, weight_oihw, bias):
    """tanh(Conv2d(3, 32, 7, stride=(2,1), padding=(3,2), dilation=(2,1))(x))."""
    N, C, H, W = x_nchw.shape
    assert C == CIN
    hout = (H + 2 * PADDING[0] - DILATION[0] * (KH - 1) - 1) // STRIDE[0] + 1
    wout = (W + 2 * PADDING[1] - DILATION[1] * (KW - 1) - 1) // STRIDE[1] + 1
    wp = W + 2 * PADDING[1]
    hout_pad = ((hout + TH - 1) // TH) * TH
    he = hout + (KH - 1)                      # even padded rows the conv touches
    he_pad = hout_pad + (KH - 1)

    # Pad H by (3,3) and W by (2,2); keep only even padded rows (the only rows
    # a stride-2 / dilation-2 / pad-3 conv reads); fold channels into the row
    # axis as (row, ci); pad rows up to the blocked height; cast to bf16.
    xp = jnp.pad(x_nchw, ((0, 0), (0, 0),
                          (PADDING[0], PADDING[0]), (PADDING[1], PADDING[1])))
    xe = xp[:, :, ::2, :]                                   # (N, CIN, he, wp)
    assert xe.shape[2] == he, (xe.shape, he)
    xe = jnp.pad(xe, ((0, 0), (0, 0), (0, he_pad - he), (0, 0)))
    x_prep = jnp.transpose(xe, (0, 2, 1, 3)).reshape(
        N, he_pad * CIN, wp).astype(jnp.bfloat16)

    # PyTorch weight (Cout, Cin, KH, KW) -> (Cout, KW, KH, Cin) -> (Cout, 147)
    # to match the kernel's K order (kw-major, then kh, then ci).
    w_t = jnp.transpose(weight_oihw, (0, 3, 2, 1)).reshape(
        COUT, KDIM).astype(jnp.bfloat16)
    b_t = bias.reshape(COUT, 1).astype(jnp.float32)

    grid = (N, hout_pad // TH)
    kernel = functools.partial(_conv_tanh_kernel, wout=wout)

    out = pl.pallas_call(
        kernel,
        out_shape=jax.ShapeDtypeStruct((N, hout_pad, COUT, wout), jnp.float32),
        grid_spec=pltpu.PrefetchScalarGridSpec(
            num_scalar_prefetch=0,
            grid=grid,
            in_specs=[
                # whole per-sample slab; stays resident across the rb axis
                pl.BlockSpec((1, he_pad * CIN, wp), lambda n, rb: (n, 0, 0)),
                pl.BlockSpec((COUT, KDIM), lambda n, rb: (0, 0)),
                pl.BlockSpec((COUT, 1), lambda n, rb: (0, 0)),
            ],
            out_specs=pl.BlockSpec((1, TH, COUT, wout),
                                   lambda n, rb: (n, rb, 0, 0)),
        ),
        compiler_params=pltpu.CompilerParams(
            dimension_semantics=("parallel", "parallel")),
    )(x_prep, w_t, b_t)

    out = out[:, :hout]                            # drop padded output rows
    return jnp.transpose(out, (0, 2, 1, 3))        # (N, Cout, Hout, Wout)


if __name__ == "__main__":
    key = jax.random.PRNGKey(0)
    kx, k_w, kb = jax.random.split(key, 3)

    # Small shapes consistent with the module: NCHW input with Cin=3.
    N, H, W = 2, 16, 16
    x = jax.random.normal(kx, (N, CIN, H, W), dtype=jnp.float32)

    fan_in = CIN * KH * KW
    weight = jax.random.normal(k_w, (COUT, CIN, KH, KW),
                               dtype=jnp.float32) / jnp.sqrt(fan_in)
    bias = jax.random.normal(kb, (COUT,), dtype=jnp.float32) * 0.1

    fwd = jax.jit(model_tanh_forward)
    y = jax.block_until_ready(fwd(x, weight, bias))

    # Reference: XLA dilated conv in full f32 precision + tanh.
    ref = jax.lax.conv_general_dilated(
        x, weight,
        window_strides=STRIDE,
        padding=((PADDING[0], PADDING[0]), (PADDING[1], PADDING[1])),
        rhs_dilation=DILATION,
        dimension_numbers=("NCHW", "OIHW", "NCHW"),
        precision=jax.lax.Precision.HIGHEST)
    ref = jnp.tanh(ref + bias.reshape(1, COUT, 1, 1))

    assert y.shape == ref.shape, (y.shape, ref.shape)
    # bf16 matmul operands (f32 accumulate) -> relaxed tolerance per review.
    err = float(jnp.max(jnp.abs(y - ref)))
    assert jnp.allclose(y, ref, atol=2e-2, rtol=2e-2), err
    print("KERNEL_OK")
</pallas_src>

<mosaic_0001>
module attributes {stable_mosaic.version = 11 : i64} {
  func.func @_conv_tanh_kernel(%arg0: i32, %arg1: i32, %arg2: memref<1x42x20xbf16, #tpu.memory_space<vmem>>, %arg3: memref<32x147xbf16, #tpu.memory_space<vmem>>, %arg4: memref<32x1xf32, #tpu.memory_space<vmem>>, %arg5: memref<1x8x32x14xf32, #tpu.memory_space<vmem>>) attributes {dimension_semantics = [#tpu.dimension_semantics<parallel>, #tpu.dimension_semantics<parallel>], iteration_bounds = array<i64: 2, 1>, scalar_prefetch = 0 : i64, scratch_operands = 0 : i64, tpu.core_type = #tpu.core_type<tc>, window_params = [{transform_indices = @transform_0, window_bounds = array<i64: 1, 42, 20>}, {pipeline_mode = #tpu.pipeline_mode<synchronous>, transform_indices = @transform_1, window_bounds = array<i64: 32, 147>}, {pipeline_mode = #tpu.pipeline_mode<synchronous>, transform_indices = @transform_2, window_bounds = array<i64: 32, 1>}, {transform_indices = @transform_3, window_bounds = array<i64: 1, 8, 32, 14>}]} {
    %c24_i32 = arith.constant 24 : i32
    %0 = arith.muli %c24_i32, %arg1 : i32
    %1 = tpu.assume_multiple %0, 8 : i32
    %c0 = arith.constant 0 : index
    %2 = arith.index_cast %1 : i32 to index
    %c0_0 = arith.constant 0 : index
    %3 = vector.load %arg2[%c0, %2, %c0_0] : memref<1x42x20xbf16, #tpu.memory_space<vmem>>, vector<1x42x20xbf16>
    %4 = vector.shape_cast %3 : vector<1x42x20xbf16> to vector<42x20xbf16>
    %5 = arith.extf %4 : vector<42x20xbf16> to vector<42x20xf32>
    %c0_1 = arith.constant 0 : index
    %c0_2 = arith.constant 0 : index
    %6 = vector.load %arg3[%c0_1, %c0_2] : memref<32x147xbf16, #tpu.memory_space<vmem>>, vector<32x147xbf16>
    %c0_3 = arith.constant 0 : index
    %c0_4 = arith.constant 0 : index
    %7 = vector.load %arg4[%c0_3, %c0_4] : memref<32x1xf32, #tpu.memory_space<vmem>>, vector<32x1xf32>
    %8 = vector.extract_strided_slice %5 {offsets = [0, 0], sizes = [21, 14], strides = [1, 1]} : vector<42x20xf32> to vector<21x14xf32>
    %9 = vector.extract_strided_slice %5 {offsets = [0, 1], sizes = [21, 14], strides = [1, 1]} : vector<42x20xf32> to vector<21x14xf32>
    %10 = vector.extract_strided_slice %5 {offsets = [0, 2], sizes = [21, 14], strides = [1, 1]} : vector<42x20xf32> to vector<21x14xf32>
    %11 = vector.extract_strided_slice %5 {offsets = [0, 3], sizes = [21, 14], strides = [1, 1]} : vector<42x20xf32> to vector<21x14xf32>
    %12 = vector.extract_strided_slice %5 {offsets = [0, 4], sizes = [21, 14], strides = [1, 1]} : vector<42x20xf32> to vector<21x14xf32>
    %13 = vector.extract_strided_slice %5 {offsets = [0, 5], sizes = [21, 14], strides = [1, 1]} : vector<42x20xf32> to vector<21x14xf32>
    %14 = vector.extract_strided_slice %5 {offsets = [0, 6], sizes = [21, 14], strides = [1, 1]} : vector<42x20xf32> to vector<21x14xf32>
    %15 = tpu.concatenate %8, %9, %10, %11, %12, %13, %14 in 0 : vector<21x14xf32>, vector<21x14xf32>, vector<21x14xf32>, vector<21x14xf32>, vector<21x14xf32>, vector<21x14xf32>, vector<21x14xf32> -> vector<147x14xf32>
    %16 = arith.truncf %15 : vector<147x14xf32> to vector<147x14xbf16>
    %cst = arith.constant dense<0.000000e+00> : vector<32x14xf32>
    %17 = tpu.matmul %6, %16, %cst {dimension_numbers = #tpu.dot_dimension_numbers<[1], [0], [0], [1], [0, 0, 1, 1], [], []>} : vector<32x147xbf16>, vector<147x14xbf16>, vector<32x14xf32> -> vector<32x14xf32>
    %18 = vector.broadcast %7 : vector<32x1xf32> to vector<32x14xf32>
    %19 = arith.addf %17, %18 : vector<32x14xf32>
    %20 = math.tanh %19 : vector<32x14xf32>
    %c0_5 = arith.constant 0 : index
    %c0_6 = arith.constant 0 : index
    %c0_7 = arith.constant 0 : index
    %c0_8 = arith.constant 0 : index
    %21 = vector.load %arg5[%c0_5, %c0_6, %c0_7, %c0_8] : memref<1x8x32x14xf32, #tpu.memory_space<vmem>>, vector<1x1x32x14xf32>
    %22 = vector.shape_cast %21 : vector<1x1x32x14xf32> to vector<32x14xf32>
    %23 = vector.shape_cast %20 : vector<32x14xf32> to vector<1x1x32x14xf32>
    tpu.vector_store %arg5[%c0_5, %c0_6, %c0_7, %c0_8], %23 {strides = array<i32>} : memref<1x8x32x14xf32, #tpu.memory_space<vmem>>, vector<1x1x32x14xf32>,
    %24 = vector.extract_strided_slice %5 {offsets = [3, 0], sizes = [21, 14], strides = [1, 1]} : vector<42x20xf32> to vector<21x14xf32>
    %25 = vector.extract_strided_slice %5 {offsets = [3, 1], sizes = [21, 14], strides = [1, 1]} : vector<42x20xf32> to vector<21x14xf32>
    %26 = vector.extract_strided_slice %5 {offsets = [3, 2], sizes = [21, 14], strides = [1, 1]} : vector<42x20xf32> to vector<21x14xf32>
    %27 = vector.extract_strided_slice %5 {offsets = [3, 3], sizes = [21, 14], strides = [1, 1]} : vector<42x20xf32> to vector<21x14xf32>
    %28 = vector.extract_strided_slice %5 {offsets = [3, 4], sizes = [21, 14], strides = [1, 1]} : vector<42x20xf32> to vector<21x14xf32>
    %29 = vector.extract_strided_slice %5 {offsets = [3, 5], sizes = [21, 14], strides = [1, 1]} : vector<42x20xf32> to vector<21x14xf32>
    %30 = vector.extract_strided_slice %5 {offsets = [3, 6], sizes = [21, 14], strides = [1, 1]} : vector<42x20xf32> to vector<21x14xf32>
    %31 = tpu.concatenate %24, %25, %26, %27, %28, %29, %30 in 0 : vector<21x14xf32>, vector<21x14xf32>, vector<21x14xf32>, vector<21x14xf32>, vector<21x14xf32>, vector<21x14xf32>, vector<21x14xf32> -> vector<147x14xf32>
    %32 = arith.truncf %31 : vector<147x14xf32> to vector<147x14xbf16>
    %cst_9 = arith.constant dense<0.000000e+00> : vector<32x14xf32>
    %33 = tpu.matmul %6, %32, %cst_9 {dimension_numbers = #tpu.dot_dimension_numbers<[1], [0], [0], [1], [0, 0, 1, 1], [], []>} : vector<32x147xbf16>, vector<147x14xbf16>, vector<32x14xf32> -> vector<32x14xf32>
    %34 = vector.broadcast %7 : vector<32x1xf32> to vector<32x14xf32>
    %35 = arith.addf %33, %34 : vector<32x14xf32>
    %36 = math.tanh %35 : vector<32x14xf32>
    %c0_10 = arith.constant 0 : index
    %c1 = arith.constant 1 : index
    %c0_11 = arith.constant 0 : index
    %c0_12 = arith.constant 0 : index
    %37 = vector.load %arg5[%c0_10, %c1, %c0_11, %c0_12] : memref<1x8x32x14xf32, #tpu.memory_space<vmem>>, vector<1x1x32x14xf32>
    %38 = vector.shape_cast %37 : vector<1x1x32x14xf32> to vector<32x14xf32>
    %39 = vector.shape_cast %36 : vector<32x14xf32> to vector<1x1x32x14xf32>
    tpu.vector_store %arg5[%c0_10, %c1, %c0_11, %c0_12], %39 {strides = array<i32>} : memref<1x8x32x14xf32, #tpu.memory_space<vmem>>, vector<1x1x32x14xf32>,
    %40 = vector.extract_strided_slice %5 {offsets = [6, 0], sizes = [21, 14], strides = [1, 1]} : vector<42x20xf32> to vector<21x14xf32>
    %41 = vector.extract_strided_slice %5 {offsets = [6, 1], sizes = [21, 14], strides = [1, 1]} : vector<42x20xf32> to vector<21x14xf32>
    %42 = vector.extract_strided_slice %5 {offsets = [6, 2], sizes = [21, 14], strides = [1, 1]} : vector<42x20xf32> to vector<21x14xf32>
    %43 = vector.extract_strided_slice %5 {offsets = [6, 3], sizes = [21, 14], strides = [1, 1]} : vector<42x20xf32> to vector<21x14xf32>
    %44 = vector.extract_strided_slice %5 {offsets = [6, 4], sizes = [21, 14], strides = [1, 1]} : vector<42x20xf32> to vector<21x14xf32>
    %45 = vector.extract_strided_slice %5 {offsets = [6, 5], sizes = [21, 14], strides = [1, 1]} : vector<42x20xf32> to vector<21x14xf32>
    %46 = vector.extract_strided_slice %5 {offsets = [6, 6], sizes = [21, 14], strides = [1, 1]} : vector<42x20xf32> to vector<21x14xf32>
    %47 = tpu.concatenate %40, %41, %42, %43, %44, %45, %46 in 0 : vector<21x14xf32>, vector<21x14xf32>, vector<21x14xf32>, vector<21x14xf32>, vector<21x14xf32>, vector<21x14xf32>, vector<21x14xf32> -> vector<147x14xf32>
    %48 = arith.truncf %47 : vector<147x14xf32> to vector<147x14xbf16>
    %cst_13 = arith.constant dense<0.000000e+00> : vector<32x14xf32>
    %49 = tpu.matmul %6, %48, %cst_13 {dimension_numbers = #tpu.dot_dimension_numbers<[1], [0], [0], [1], [0, 0, 1, 1], [], []>} : vector<32x147xbf16>, vector<147x14xbf16>, vector<32x14xf32> -> vector<32x14xf32>
    %50 = vector.broadcast %7 : vector<32x1xf32> to vector<32x14xf32>
    %51 = arith.addf %49, %50 : vector<32x14xf32>
    %52 = math.tanh %51 : vector<32x14xf32>
    %c0_14 = arith.constant 0 : index
    %c2 = arith.constant 2 : index
    %c0_15 = arith.constant 0 : index
    %c0_16 = arith.constant 0 : index
    %53 = vector.load %arg5[%c0_14, %c2, %c0_15, %c0_16] : memref<1x8x32x14xf32, #tpu.memory_space<vmem>>, vector<1x1x32x14xf32>
    %54 = vector.shape_cast %53 : vector<1x1x32x14xf32> to vector<32x14xf32>
    %55 = vector.shape_cast %52 : vector<32x14xf32> to vector<1x1x32x14xf32>
    tpu.vector_store %arg5[%c0_14, %c2, %c0_15, %c0_16], %55 {strides = array<i32>} : memref<1x8x32x14xf32, #tpu.memory_space<vmem>>, vector<1x1x32x14xf32>,
    %56 = vector.extract_strided_slice %5 {offsets = [9, 0], sizes = [21, 14], strides = [1, 1]} : vector<42x20xf32> to vector<21x14xf32>
    %57 = vector.extract_strided_slice %5 {offsets = [9, 1], sizes = [21, 14], strides = [1, 1]} : vector<42x20xf32> to vector<21x14xf32>
    %58 = vector.extract_strided_slice %5 {offsets = [9, 2], sizes = [21, 14], strides = [1, 1]} : vector<42x20xf32> to vector<21x14xf32>
    %59 = vector.extract_strided_slice %5 {offsets = [9, 3], sizes = [21, 14], strides = [1, 1]} : vector<42x20xf32> to vector<21x14xf32>
    %60 = vector.extract_strided_slice %5 {offsets = [9, 4], sizes = [21, 14], strides = [1, 1]} : vector<42x20xf32> to vector<21x14xf32>
    %61 = vector.extract_strided_slice %5 {offsets = [9, 5], sizes = [21, 14], strides = [1, 1]} : vector<42x20xf32> to vector<21x14xf32>
    %62 = vector.extract_strided_slice %5 {offsets = [9, 6], sizes = [21, 14], strides = [1, 1]} : vector<42x20xf32> to vector<21x14xf32>
    %63 = tpu.concatenate %56, %57, %58, %59, %60, %61, %62 in 0 : vector<21x14xf32>, vector<21x14xf32>, vector<21x14xf32>, vector<21x14xf32>, vector<21x14xf32>, vector<21x14xf32>, vector<21x14xf32> -> vector<147x14xf32>
    %64 = arith.truncf %63 : vector<147x14xf32> to vector<147x14xbf16>
    %cst_17 = arith.constant dense<0.000000e+00> : vector<32x14xf32>
    %65 = tpu.matmul %6, %64, %cst_17 {dimension_numbers = #tpu.dot_dimension_numbers<[1], [0], [0], [1], [0, 0, 1, 1], [], []>} : vector<32x147xbf16>, vector<147x14xbf16>, vector<32x14xf32> -> vector<32x14xf32>
    %66 = vector.broadcast %7 : vector<32x1xf32> to vector<32x14xf32>
    %67 = arith.addf %65, %66 : vector<32x14xf32>
    %68 = math.tanh %67 : vector<32x14xf32>
    %c0_18 = arith.constant 0 : index
    %c3 = arith.constant 3 : index
    %c0_19 = arith.constant 0 : index
    %c0_20 = arith.constant 0 : index
    %69 = vector.load %arg5[%c0_18, %c3, %c0_19, %c0_20] : memref<1x8x32x14xf32, #tpu.memory_space<vmem>>, vector<1x1x32x14xf32>
    %70 = vector.shape_cast %69 : vector<1x1x32x14xf32> to vector<32x14xf32>
    %71 = vector.shape_cast %68 : vector<32x14xf32> to vector<1x1x32x14xf32>
    tpu.vector_store %arg5[%c0_18, %c3, %c0_19, %c0_20], %71 {strides = array<i32>} : memref<1x8x32x14xf32, #tpu.memory_space<vmem>>, vector<1x1x32x14xf32>,
    %72 = vector.extract_strided_slice %5 {offsets = [12, 0], sizes = [21, 14], strides = [1, 1]} : vector<42x20xf32> to vector<21x14xf32>
    %73 = vector.extract_strided_slice %5 {offsets = [12, 1], sizes = [21, 14], strides = [1, 1]} : vector<42x20xf32> to vector<21x14xf32>
    %74 = vector.extract_strided_slice %5 {offsets = [12, 2], sizes = [21, 14], strides = [1, 1]} : vector<42x20xf32> to vector<21x14xf32>
    %75 = vector.extract_strided_slice %5 {offsets = [12, 3], sizes = [21, 14], strides = [1, 1]} : vector<42x20xf32> to vector<21x14xf32>
    %76 = vector.extract_strided_slice %5 {offsets = [12, 4], sizes = [21, 14], strides = [1, 1]} : vector<42x20xf32> to vector<21x14xf32>
    %77 = vector.extract_strided_slice %5 {offsets = [12, 5], sizes = [21, 14], strides = [1, 1]} : vector<42x20xf32> to vector<21x14xf32>
    %78 = vector.extract_strided_slice %5 {offsets = [12, 6], sizes = [21, 14], strides = [1, 1]} : vector<42x20xf32> to vector<21x14xf32>
    %79 = tpu.concatenate %72, %73, %74, %75, %76, %77, %78 in 0 : vector<21x14xf32>, vector<21x14xf32>, vector<21x14xf32>, vector<21x14xf32>, vector<21x14xf32>, vector<21x14xf32>, vector<21x14xf32> -> vector<147x14xf32>
    %80 = arith.truncf %79 : vector<147x14xf32> to vector<147x14xbf16>
    %cst_21 = arith.constant dense<0.000000e+00> : vector<32x14xf32>
    %81 = tpu.matmul %6, %80, %cst_21 {dimension_numbers = #tpu.dot_dimension_numbers<[1], [0], [0], [1], [0, 0, 1, 1], [], []>} : vector<32x147xbf16>, vector<147x14xbf16>, vector<32x14xf32> -> vector<32x14xf32>
    %82 = vector.broadcast %7 : vector<32x1xf32> to vector<32x14xf32>
    %83 = arith.addf %81, %82 : vector<32x14xf32>
    %84 = math.tanh %83 : vector<32x14xf32>
    %c0_22 = arith.constant 0 : index
    %c4 = arith.constant 4 : index
    %c0_23 = arith.constant 0 : index
    %c0_24 = arith.constant 0 : index
    %85 = vector.load %arg5[%c0_22, %c4, %c0_23, %c0_24] : memref<1x8x32x14xf32, #tpu.memory_space<vmem>>, vector<1x1x32x14xf32>
    %86 = vector.shape_cast %85 : vector<1x1x32x14xf32> to vector<32x14xf32>
    %87 = vector.shape_cast %84 : vector<32x14xf32> to vector<1x1x32x14xf32>
    tpu.vector_store %arg5[%c0_22, %c4, %c0_23, %c0_24], %87 {strides = array<i32>} : memref<1x8x32x14xf32, #tpu.memory_space<vmem>>, vector<1x1x32x14xf32>,
    %88 = vector.extract_strided_slice %5 {offsets = [15, 0], sizes = [21, 14], strides = [1, 1]} : vector<42x20xf32> to vector<21x14xf32>
    %89 = vector.extract_strided_slice %5 {offsets = [15, 1], sizes = [21, 14], strides = [1, 1]} : vector<42x20xf32> to vector<21x14xf32>
    %90 = vector.extract_strided_slice %5 {offsets = [15, 2], sizes = [21, 14], strides = [1, 1]} : vector<42x20xf32> to vector<21x14xf32>
    %91 = vector.extract_strided_slice %5 {offsets = [15, 3], sizes = [21, 14], strides = [1, 1]} : vector<42x20xf32> to vector<21x14xf32>
    %92 = vector.extract_strided_slice %5 {offsets = [15, 4], sizes = [21, 14], strides = [1, 1]} : vector<42x20xf32> to vector<21x14xf32>
    %93 = vector.extract_strided_slice %5 {offsets = [15, 5], sizes = [21, 14], strides = [1, 1]} : vector<42x20xf32> to vector<21x14xf32>
    %94 = vector.extract_strided_slice %5 {offsets = [15, 6], sizes = [21, 14], strides = [1, 1]} : vector<42x20xf32> to vector<21x14xf32>
    %95 = tpu.concatenate %88, %89, %90, %91, %92, %93, %94 in 0 : vector<21x14xf32>, vector<21x14xf32>, vector<21x14xf32>, vector<21x14xf32>, vector<21x14xf32>, vector<21x14xf32>, vector<21x14xf32> -> vector<147x14xf32>
    %96 = arith.truncf %95 : vector<147x14xf32> to vector<147x14xbf16>
    %cst_25 = arith.constant dense<0.000000e+00> : vector<32x14xf32>
    %97 = tpu.matmul %6, %96, %cst_25 {dimension_numbers = #tpu.dot_dimension_numbers<[1], [0], [0], [1], [0, 0, 1, 1], [], []>} : vector<32x147xbf16>, vector<147x14xbf16>, vector<32x14xf32> -> vector<32x14xf32>
    %98 = vector.broadcast %7 : vector<32x1xf32> to vector<32x14xf32>
    %99 = arith.addf %97, %98 : vector<32x14xf32>
    %100 = math.tanh %99 : vector<32x14xf32>
    %c0_26 = arith.constant 0 : index
    %c5 = arith.constant 5 : index
    %c0_27 = arith.constant 0 : index
    %c0_28 = arith.constant 0 : index
    %101 = vector.load %arg5[%c0_26, %c5, %c0_27, %c0_28] : memref<1x8x32x14xf32, #tpu.memory_space<vmem>>, vector<1x1x32x14xf32>
    %102 = vector.shape_cast %101 : vector<1x1x32x14xf32> to vector<32x14xf32>
    %103 = vector.shape_cast %100 : vector<32x14xf32> to vector<1x1x32x14xf32>
    tpu.vector_store %arg5[%c0_26, %c5, %c0_27, %c0_28], %103 {strides = array<i32>} : memref<1x8x32x14xf32, #tpu.memory_space<vmem>>, vector<1x1x32x14xf32>,
    %104 = vector.extract_strided_slice %5 {offsets = [18, 0], sizes = [21, 14], strides = [1, 1]} : vector<42x20xf32> to vector<21x14xf32>
    %105 = vector.extract_strided_slice %5 {offsets = [18, 1], sizes = [21, 14], strides = [1, 1]} : vector<42x20xf32> to vector<21x14xf32>
    %106 = vector.extract_strided_slice %5 {offsets = [18, 2], sizes = [21, 14], strides = [1, 1]} : vector<42x20xf32> to vector<21x14xf32>
    %107 = vector.extract_strided_slice %5 {offsets = [18, 3], sizes = [21, 14], strides = [1, 1]} : vector<42x20xf32> to vector<21x14xf32>
    %108 = vector.extract_strided_slice %5 {offsets = [18, 4], sizes = [21, 14], strides = [1, 1]} : vector<42x20xf32> to vector<21x14xf32>
    %109 = vector.extract_strided_slice %5 {offsets = [18, 5], sizes = [21, 14], strides = [1, 1]} : vector<42x20xf32> to vector<21x14xf32>
    %110 = vector.extract_strided_slice %5 {offsets = [18, 6], sizes = [21, 14], strides = [1, 1]} : vector<42x20xf32> to vector<21x14xf32>
    %111 = tpu.concatenate %104, %105, %106, %107, %108, %109, %110 in 0 : vector<21x14xf32>, vector<21x14xf32>, vector<21x14xf32>, vector<21x14xf32>, vector<21x14xf32>, vector<21x14xf32>, vector<21x14xf32> -> vector<147x14xf32>
    %112 = arith.truncf %111 : vector<147x14xf32> to vector<147x14xbf16>
    %cst_29 = arith.constant dense<0.000000e+00> : vector<32x14xf32>
    %113 = tpu.matmul %6, %112, %cst_29 {dimension_numbers = #tpu.dot_dimension_numbers<[1], [0], [0], [1], [0, 0, 1, 1], [], []>} : vector<32x147xbf16>, vector<147x14xbf16>, vector<32x14xf32> -> vector<32x14xf32>
    %114 = vector.broadcast %7 : vector<32x1xf32> to vector<32x14xf32>
    %115 = arith.addf %113, %114 : vector<32x14xf32>
    %116 = math.tanh %115 : vector<32x14xf32>
    %c0_30 = arith.constant 0 : index
    %c6 = arith.constant 6 : index
    %c0_31 = arith.constant 0 : index
    %c0_32 = arith.constant 0 : index
    %117 = vector.load %arg5[%c0_30, %c6, %c0_31, %c0_32] : memref<1x8x32x14xf32, #tpu.memory_space<vmem>>, vector<1x1x32x14xf32>
    %118 = vector.shape_cast %117 : vector<1x1x32x14xf32> to vector<32x14xf32>
    %119 = vector.shape_cast %116 : vector<32x14xf32> to vector<1x1x32x14xf32>
    tpu.vector_store %arg5[%c0_30, %c6, %c0_31, %c0_32], %119 {strides = array<i32>} : memref<1x8x32x14xf32, #tpu.memory_space<vmem>>, vector<1x1x32x14xf32>,
    %120 = vector.extract_strided_slice %5 {offsets = [21, 0], sizes = [21, 14], strides = [1, 1]} : vector<42x20xf32> to vector<21x14xf32>
    %121 = vector.extract_strided_slice %5 {offsets = [21, 1], sizes = [21, 14], strides = [1, 1]} : vector<42x20xf32> to vector<21x14xf32>
    %122 = vector.extract_strided_slice %5 {offsets = [21, 2], sizes = [21, 14], strides = [1, 1]} : vector<42x20xf32> to vector<21x14xf32>
    %123 = vector.extract_strided_slice %5 {offsets = [21, 3], sizes = [21, 14], strides = [1, 1]} : vector<42x20xf32> to vector<21x14xf32>
    %124 = vector.extract_strided_slice %5 {offsets = [21, 4], sizes = [21, 14], strides = [1, 1]} : vector<42x20xf32> to vector<21x14xf32>
    %125 = vector.extract_strided_slice %5 {offsets = [21, 5], sizes = [21, 14], strides = [1, 1]} : vector<42x20xf32> to vector<21x14xf32>
    %126 = vector.extract_strided_slice %5 {offsets = [21, 6], sizes = [21, 14], strides = [1, 1]} : vector<42x20xf32> to vector<21x14xf32>
    %127 = tpu.concatenate %120, %121, %122, %123, %124, %125, %126 in 0 : vector<21x14xf32>, vector<21x14xf32>, vector<21x14xf32>, vector<21x14xf32>, vector<21x14xf32>, vector<21x14xf32>, vector<21x14xf32> -> vector<147x14xf32>
    %128 = arith.truncf %127 : vector<147x14xf32> to vector<147x14xbf16>
    %cst_33 = arith.constant dense<0.000000e+00> : vector<32x14xf32>
    %129 = tpu.matmul %6, %128, %cst_33 {dimension_numbers = #tpu.dot_dimension_numbers<[1], [0], [0], [1], [0, 0, 1, 1], [], []>} : vector<32x147xbf16>, vector<147x14xbf16>, vector<32x14xf32> -> vector<32x14xf32>
    %130 = vector.broadcast %7 : vector<32x1xf32> to vector<32x14xf32>
    %131 = arith.addf %129, %130 : vector<32x14xf32>
    %132 = math.tanh %131 : vector<32x14xf32>
    %c0_34 = arith.constant 0 : index
    %c7 = arith.constant 7 : index
    %c0_35 = arith.constant 0 : index
    %c0_36 = arith.constant 0 : index
    %133 = vector.load %arg5[%c0_34, %c7, %c0_35, %c0_36] : memref<1x8x32x14xf32, #tpu.memory_space<vmem>>, vector<1x1x32x14xf32>
    %134 = vector.shape_cast %133 : vector<1x1x32x14xf32> to vector<32x14xf32>
    %135 = vector.shape_cast %132 : vector<32x14xf32> to vector<1x1x32x14xf32>
    tpu.vector_store %arg5[%c0_34, %c7, %c0_35, %c0_36], %135 {strides = array<i32>} : memref<1x8x32x14xf32, #tpu.memory_space<vmem>>, vector<1x1x32x14xf32>,
    return
  }
  func.func @transform_0(%arg0: i32, %arg1: i32) -> (i32, i32, i32) {
    %c0_i32 = arith.constant 0 : i32
    %c0_i32_0 = arith.constant 0 : i32
    %c0_i32_1 = arith.constant 0 : i32
    return %arg0, %c0_i32, %c0_i32_0 : i32, i32, i32
  }
  func.func @transform_1(%arg0: i32, %arg1: i32) -> (i32, i32) {
    %c0_i32 = arith.constant 0 : i32
    %c0_i32_0 = arith.constant 0 : i32
    %c0_i32_1 = arith.constant 0 : i32
    return %c0_i32, %c0_i32_0 : i32, i32
  }
  func.func @transform_2(%arg0: i32, %arg1: i32) -> (i32, i32) {
    %c0_i32 = arith.constant 0 : i32
    %c0_i32_0 = arith.constant 0 : i32
    %c0_i32_1 = arith.constant 0 : i32
    return %c0_i32, %c0_i32_0 : i32, i32
  }
  func.func @transform_3(%arg0: i32, %arg1: i32) -> (i32, i32, i32, i32) {
    %c0_i32 = arith.constant 0 : i32
    %c0_i32_0 = arith.constant 0 : i32
    %c0_i32_1 = arith.constant 0 : i32
    return %arg0, %arg1, %c0_i32, %c0_i32_0 : i32, i32, i32, i32
  }
}

</mosaic_0001>

<llo_original>
// kernel: model_tanh_forward.1
$region0: #{model_tanh_forward.1}
  #allocation0 [shape = 'u32[]', space=smem, size = 0x4, offset = 0x4, fixed_abs, tag = 'smem constant byte address 0x4 - core index']
  #allocation1 [shape = 'u32[144,128]{1,0:T(1,128)}', space=vmem, size = 0x12000, scoped, tag = 'internal scratch']
  %s0 = inlined_call_operand.vmem [shape: bf16[2,42,20], index: 0, kind: input, shape index: {}]
  %s1 = inlined_call_operand.vmem [shape: bf16[32,147], index: 1, kind: input, shape index: {}]
  %s2 = inlined_call_operand.vmem [shape: f32[32,1], index: 2, kind: input, shape index: {}]
  %s3 = inlined_call_operand.vmem [shape: f32[2,8,32,14], index: 3, kind: output, shape index: {}]
  %s4 = sld [smem:[#allocation0]]
  $region45: #{model_tanh_forward.1} parent=0
    _
  %s6 = ssub.s32 1, %s4
  %s7 = scalar_select 0, %s6, %s4
  loop: start=0, step=1, limit=4
  $region2: #{model_tanh_forward.1} parent=0 // loop_pre_header
    _
  $region3: #{model_tanh_forward.1} parent=0 // loop_header
    %s9 = sphi 0, %s13
    %p10 = scmp.ge.s32.totalorder %s9, 4
    %s16 = sphi 0, %s28
    %s17 = sphi 0, %s24
    %s18 = sphi 0, %s16
    %s19 = sphi 0, %s17
    %s20 = sphi 0, %s18
    %s21 = sphi 0, %s19
    %s31 = sphi 0, %s33
    %s34 = sphi 0, %s31
    %s35 = sphi 0, %s34
    %s51 = sphi 0, %s35
    %s55 = sphi 0, %s55
    %s57 = sphi 0, %s55
    %s58 = sphi 0, %s57
    %s72 = sphi 0, %s58
    %s76 = sphi 0, %s76
    %s78 = sphi 0, %s76
    %s79 = sphi 0, %s78
    %s93 = sphi 0, %s79
    %s101 = sphi 0, %s103
    %s104 = sphi 0, %s101
    %s105 = sphi 0, %s104
    %s121 = sphi 0, %s105
  $region4: #{model_tanh_forward.1} parent=0 // loop_header_branch
    %12 = sbr.rel (%p10) target = $region8
  $region5: #{model_tanh_forward.1} parent=0 // loop_body
    %s14 = ssub.s32 %s9, 1
    %s15 = ssub.s32 %s9, 2
    %s22 = sadd.s32 1, %s17
    %p23 = scmp.ge.s32.totalorder %s22, 1
    %s24 = scalar_select %p23, 0, %s22
    %s25 = sadd.s32 1, %s16
    %s26 = scalar_select %p23, %s25, %s16
    %p27 = scmp.ge.s32.totalorder %s26, 2
    %s28 = scalar_select %p27, 0, %s26
    %s29 = ssub.s32 %s16, %s28
    %p30 = scmp.eq.s32.totalorder %s29, 0
    %s32 = sadd.s32 %s31, 1
    %s33 = scalar_select %p30, %s31, %s32
    %p36 = pneg %p30
    %p37 = scmp.eq.s32.totalorder %s9, 1
    %p38 = por %p36, %p37
    %p39 = scmp.ne.s32.totalorder %s31, %s34
    %p40 = scmp.eq.s32.totalorder %s9, 0
    %p41 = por %p39, %p40
    %p42 = scmp.ne.s32.totalorder %s31, %s34
    %p43 = scmp.eq.s32.totalorder %s14, 1
    %p44 = por %p42, %p43
    %p45 = scmp.ne.s32.totalorder %s34, %s35
    %p46 = scmp.eq.s32.totalorder %s14, 0
    %p47 = por %p45, %p46
    %p48 = scmp.ne.s32.totalorder %s34, %s35
    %p49 = scmp.eq.s32.totalorder %s15, 1
    %p50 = por %p48, %p49
    %p52 = scmp.ne.s32.totalorder %s35, %s51
    %p53 = scmp.eq.s32.totalorder %s15, 0
    %p54 = por %p52, %p53
    %s56 = sadd.s32 %s55, 1
    %p59 = scmp.eq.s32.totalorder %s9, 1
    %p60 = scmp.ne.s32.totalorder %s55, %s57
    %p61 = scmp.eq.s32.totalorder %s9, 0
    %p62 = por %p60, %p61
    %p63 = scmp.ne.s32.totalorder %s55, %s57
    %p64 = scmp.eq.s32.totalorder %s14, 1
    %p65 = por %p63, %p64
    %p66 = scmp.ne.s32.totalorder %s57, %s58
    %p67 = scmp.eq.s32.totalorder %s14, 0
    %p68 = por %p66, %p67
    %p69 = scmp.ne.s32.totalorder %s57, %s58
    %p70 = scmp.eq.s32.totalorder %s15, 1
    %p71 = por %p69, %p70
    %p73 = scmp.ne.s32.totalorder %s58, %s72
    %p74 = scmp.eq.s32.totalorder %s15, 0
    %p75 = por %p73, %p74
    %s77 = sadd.s32 %s76, 1
    %p80 = scmp.eq.s32.totalorder %s9, 1
    %p81 = scmp.ne.s32.totalorder %s76, %s78
    %p82 = scmp.eq.s32.totalorder %s9, 0
    %p83 = por %p81, %p82
    %p84 = scmp.ne.s32.totalorder %s76, %s78
    %p85 = scmp.eq.s32.totalorder %s14, 1
    %p86 = por %p84, %p85
    %p87 = scmp.ne.s32.totalorder %s78, %s79
    %p88 = scmp.eq.s32.totalorder %s14, 0
    %p89 = por %p87, %p88
    %p90 = scmp.ne.s32.totalorder %s78, %s79
    %p91 = scmp.eq.s32.totalorder %s15, 1
    %p92 = por %p90, %p91
    %p94 = scmp.ne.s32.totalorder %s79, %s93
    %p95 = scmp.eq.s32.totalorder %s15, 0
    %p96 = por %p94, %p95
    %s97 = ssub.s32 %s16, %s28
    %s98 = ssub.s32 %s17, %s24
    %s99 = sor.u32 %s97, %s98
    %p100 = scmp.eq.s32.totalorder %s99, 0
    %s102 = sadd.s32 %s101, 1
    %s103 = scalar_select %p100, %s101, %s102
    %p106 = pneg %p100
    %p107 = scmp.eq.s32.totalorder %s9, 1
    %p108 = por %p106, %p107
    %p109 = scmp.ne.s32.totalorder %s101, %s104
    %p110 = scmp.eq.s32.totalorder %s9, 0
    %p111 = por %p109, %p110
    %p112 = scmp.ne.s32.totalorder %s101, %s104
    %p113 = scmp.eq.s32.totalorder %s14, 1
    %p114 = por %p112, %p113
    %p115 = scmp.ne.s32.totalorder %s104, %s105
    %p116 = scmp.eq.s32.totalorder %s14, 0
    %p117 = por %p115, %p116
    %p118 = scmp.ne.s32.totalorder %s104, %s105
    %p119 = scmp.eq.s32.totalorder %s15, 1
    %p120 = por %p118, %p119
    %p122 = scmp.ne.s32.totalorder %s105, %s121
    %p123 = scmp.eq.s32.totalorder %s15, 0
    %p124 = por %p122, %p123
    %p125 = scmp.le.s32.totalorder 1, %s9
    %p126 = scmp.lt.s32.totalorder %s9, 3
    %p127 = pnand %p125, %p126
    %p128 = pneg %p127
    // Predicated region
    $region9: #{model_tanh_forward.1} parent=5 // pred_check
      _
    $region10: #{model_tanh_forward.1} parent=5 // pred_check_branch
      %130 = sbr.rel (%p127) target = $region12
    $region11: #{model_tanh_forward.1} parent=5 // pred_region
      %s131 = ssub.s32 %s9, 1
      // Predicated region
      $region13: #{model_tanh_forward.1} parent=11 // pred_check
        %p132 = pneg %p68
      $region14: #{model_tanh_forward.1} parent=11 // pred_check_branch
        %134 = sbr.rel (%p132) target = $region16
      $region15: #{model_tanh_forward.1} parent=11 // pred_region
        _
      $region16: #{model_tanh_forward.1} parent=11 // pred_fallthru
        _
      // Predicated region
      $region17: #{model_tanh_forward.1} parent=11 // pred_check
        %p135 = pneg %p89
      $region18: #{model_tanh_forward.1} parent=11 // pred_check_branch
        %137 = sbr.rel (%p135) target = $region20
      $region19: #{model_tanh_forward.1} parent=11 // pred_region
        _
      $region20: #{model_tanh_forward.1} parent=11 // pred_fallthru
        _
    $region12: #{model_tanh_forward.1} parent=5 // pred_fallthru
      _
    %p138 = scmp.lt.s32.totalorder %s9, 2
    // Predicated region
    $region21: #{model_tanh_forward.1} parent=5 // pred_check
      %p139 = pneg %p138
    $region22: #{model_tanh_forward.1} parent=5 // pred_check_branch
      %141 = sbr.rel (%p139) target = $region24
    $region23: #{model_tanh_forward.1} parent=5 // pred_region
      // Predicated region
      $region25: #{model_tanh_forward.1} parent=23 // pred_check
        %p142 = pneg %p41
      $region26: #{model_tanh_forward.1} parent=23 // pred_check_branch
        %144 = sbr.rel (%p142) target = $region28
      $region27: #{model_tanh_forward.1} parent=23 // pred_region
        %p145 = scmp.lt.s32.totalorder %s16, 1
        %s146 = scalar_select %p145, %s16, 1
        %s147 = smul.addr %s146, 6
        %s148 = smul.addr %s147, 4
        %s149 = scalar_lea.vmem %s0, %s148
      $region28: #{model_tanh_forward.1} parent=23 // pred_fallthru
        _
    $region24: #{model_tanh_forward.1} parent=5 // pred_fallthru
      _
    %p150 = scmp.le.s32.totalorder 1, %s9
    %p151 = scmp.lt.s32.totalorder %s9, 3
    %p152 = pnand %p150, %p151
    %p153 = pneg %p152
    // Predicated region
    $region29: #{model_tanh_forward.1} parent=5 // pred_check
      _
    $region30: #{model_tanh_forward.1} parent=5 // pred_check_branch
      %155 = sbr.rel (%p152) target = $region32
    $region31: #{model_tanh_forward.1} parent=5 // pred_region
      %s156 = ssub.s32 %s9, 1
      %p157 = scmp.lt.s32.totalorder %s18, 1
      %s158 = scalar_select %p157, %s18, 1
      %s159 = smul.addr %s158, 6
      %s160 = smul.addr %s159, 4
      %s161 = scalar_lea.vmem %s0, %s160
      %p162 = pneg %p47
      %p163 = pneg %p44
      %p164 = pneg %p68
      %p165 = pneg %p65
      %p166 = pneg %p89
      %p167 = pneg %p86
      %p168 = pneg %p117
      %p169 = pneg %p114
      %s170 = smul.u32 8, %s19
      %p171 = scmp.lt.s32.totalorder %s18, 1
      %s172 = scalar_select %p171, %s18, 1
      %p173 = scmp.lt.s32.totalorder %s170, 7
      %s174 = scalar_select %p173, %s170, 7
      %s175 = smul.addr %s174, 4
      %s176 = smul.addr %s172, 32
      %s177 = sadd.s32 %s175, %s176
      %s178 = smul.addr %s177, 8
      %s179 = scalar_lea.vmem %s3, %s178
      %p180 = scmp.lt.s32.totalorder %s18, 1
      %s181 = scalar_select %p180, %s18, 1
      %s182 = smul.addr %s181, 6
      %s183 = smul.addr %s182, 4
      %s184 = scalar_lea.vmem %s0, %s183
      %s185 = smul.u32 8, %s19
      %p186 = scmp.lt.s32.totalorder %s18, 1
      %s187 = scalar_select %p186, %s18, 1
      %p188 = scmp.lt.s32.totalorder %s185, 7
      %s189 = scalar_select %p188, %s185, 7
      %s190 = smul.addr %s189, 4
      %s191 = smul.addr %s187, 32
      %s192 = sadd.s32 %s190, %s191
      %s193 = smul.addr %s192, 8
      %s194 = scalar_lea.vmem %s3, %s193
      %s195 = smul.u32 8, %s19
      %s197 = smul.u32 %s19, 24
      %s198 = sshra.s32 %s197, 3
      %s199 = sand.u32 %s197, 7
      %s200 = smul.addr %s198, 4
      %s201 = scalar_lea.vmem %s184, %s200
      %v202 = vld [vmem:[%s201] sm:$0xf]
      %v203 = vld [vmem:[%s201 + $0x4] sm:$0xf]
      %v204 = vld [vmem:[%s201 + $0x8] sm:$0xf]
      %v205 = vld [vmem:[%s201 + $0xc] sm:$0xf]
      %v206 = vld [vmem:[%s201 + $0x10] sm:$0xf]
      %v207 = vld [vmem:[%s201 + $0x14] sm:$0x1]
      %v208 = vunpack.c.l.bf16 %v202
      %v209 = vunpack.c.l.bf16 %v203
      %v210 = vunpack.c.l.bf16 %v204
      %v211 = vunpack.c.l.bf16 %v205
      %v212 = vunpack.c.l.bf16 %v206
      %v213 = vunpack.c.l.bf16 %v207
      %v214 = vld [vmem:[%s1] sm:$0xff]
      %v215 = vld [vmem:[%s1 + $0x8] sm:$0xff]
      %v216 = vld [vmem:[%s1 + $0x10] sm:$0xff]
      %v217 = vld [vmem:[%s1 + $0x18] sm:$0xff]
      %v218 = vld [vmem:[%s2] sm:$0xff]
      %v219 = vld [vmem:[%s2 + $0x8] sm:$0xff]
      %v220 = vld [vmem:[%s2 + $0x10] sm:$0xff]
      %v221 = vld [vmem:[%s2 + $0x18] sm:$0xff]
      %vm225 = vcmask 1044480
      %v226 = vrot.slane %v208, 3
      %v227 = vrot.slane %v209, 3
      %v228 = vsel %vm225, %v226, %v227
      %v229 = vrot.slane %v210, 3
      %v230 = vsel %vm225, %v227, %v229
      %231 = vrot.lane.b32.xlu0 %v226, 127
      %v232 = vpop.permute.xlu0 %231
      %233 = vrot.lane.b32.xlu0 %v228, 127
      %v234 = vpop.permute.xlu0 %233
      %235 = vrot.lane.b32.xlu0 %v230, 127
      %v236 = vpop.permute.xlu0 %235
      %237 = vrot.lane.b32.xlu0 %v229, 127
      %v238 = vpop.permute.xlu0 %237
      %vm243 = vcmask 1041408
      %v244 = vrot.slane %v208, 6
      %v245 = vrot.slane %v209, 6
      %v246 = vsel %vm243, %v244, %v245
      %v247 = vrot.slane %v210, 6
      %v248 = vsel %vm243, %v245, %v247
      %249 = vrot.lane.b32.xlu0 %v244, 126
      %v250 = vpop.permute.xlu0 %249
      %251 = vrot.lane.b32.xlu0 %v246, 126
      %v252 = vpop.permute.xlu0 %251
      %253 = vrot.lane.b32.xlu0 %v248, 126
      %v254 = vpop.permute.xlu0 %253
      %vm258 = vcmask 1046528
      %v259 = vrot.slane %v208, 1
      %v260 = vrot.slane %v209, 1
      %v261 = vsel %vm258, %v259, %v260
      %v262 = vrot.slane %v210, 1
      %v263 = vsel %vm258, %v260, %v262
      %264 = vrot.lane.b32.xlu0 %v259, 125
      %v265 = vpop.permute.xlu0 %264
      %266 = vrot.lane.b32.xlu0 %v261, 125
      %v267 = vpop.permute.xlu0 %266
      %268 = vrot.lane.b32.xlu0 %v263, 125
      %v269 = vpop.permute.xlu0 %268
      %270 = vrot.lane.b32.xlu0 %v262, 125
      %v271 = vpop.permute.xlu0 %270
      %vm276 = vcmask 1043456
      %v277 = vrot.slane %v208, 4
      %v278 = vrot.slane %v209, 4
      %v279 = vsel %vm276, %v277, %v278
      %v280 = vrot.slane %v210, 4
      %v281 = vsel %vm276, %v278, %v280
      %282 = vrot.lane.b32.xlu0 %v277, 124
      %v283 = vpop.permute.xlu0 %282
      %284 = vrot.lane.b32.xlu0 %v279, 124
      %v285 = vpop.permute.xlu0 %284
      %286 = vrot.lane.b32.xlu0 %v281, 124
      %v287 = vpop.permute.xlu0 %286
      %288 = vrot.lane.b32.xlu0 %v280, 124
      %v289 = vpop.permute.xlu0 %288
      %vm294 = vcmask 1040384
      %v295 = vrot.slane %v208, 7
      %v296 = vrot.slane %v209, 7
      %v297 = vsel %vm294, %v295, %v296
      %v298 = vrot.slane %v210, 7
      %v299 = vsel %vm294, %v296, %v298
      %300 = vrot.lane.b32.xlu0 %v295, 123
      %v301 = vpop.permute.xlu0 %300
      %302 = vrot.lane.b32.xlu0 %v297, 123
      %v303 = vpop.permute.xlu0 %302
      %304 = vrot.lane.b32.xlu0 %v299, 123
      %v305 = vpop.permute.xlu0 %304
      %vm309 = vcmask 1045504
      %v310 = vrot.slane %v208, 2
      %v311 = vrot.slane %v209, 2
      %v312 = vsel %vm309, %v310, %v311
      %v313 = vrot.slane %v210, 2
      %v314 = vsel %vm309, %v311, %v313
      %315 = vrot.lane.b32.xlu0 %v310, 122
      %v316 = vpop.permute.xlu0 %315
      %317 = vrot.lane.b32.xlu0 %v312, 122
      %v318 = vpop.permute.xlu0 %317
      %319 = vrot.lane.b32.xlu0 %v314, 122
      %v320 = vpop.permute.xlu0 %319
      %321 = vrot.lane.b32.xlu0 %v313, 122
      %v322 = vpop.permute.xlu0 %321
      %v327 = vsel %vm225, %v210, %v232
      %v328 = vsel %vm243, %v238, %v250
      %v329 = vsel %vm258, %v254, %v265
      %v330 = vsel %vm276, %v271, %v283
      %v331 = vsel %vm294, %v289, %v301
      %v332 = vsel %vm309, %v305, %v316
      %v333 = vpack.c.bf16 %v209, %v208
      %v334 = vpack.c.bf16 %v234, %v327
      %v335 = vpack.c.bf16 %v328, %v236
      %v336 = vpack.c.bf16 %v329, %v252
      %v337 = vpack.c.bf16 %v269, %v267
      %v338 = vpack.c.bf16 %v285, %v330
      %v339 = vpack.c.bf16 %v331, %v287
      %v340 = vpack.c.bf16 %v332, %v303
      %v341 = vpack.c.bf16 %v320, %v318
      %v342 = vpack.c.bf16 %v322, %v322
      %344 = vset.pattern.permute.xlu0 0
      %345 = vperm.xlu0 %344, %v218
      %v346 = vpop.permute.xlu0 %345
      %349 = vset.pattern.permute.xlu0 0
      %350 = vperm.xlu0 %349, %v219
      %v351 = vpop.permute.xlu0 %350
      %354 = vset.pattern.permute.xlu0 0
      %355 = vperm.xlu0 %354, %v220
      %v356 = vpop.permute.xlu0 %355
      %359 = vset.pattern.permute.xlu0 0
      %360 = vperm.xlu0 %359, %v221
      %v361 = vpop.permute.xlu0 %360
      %v367 = vunpack.c.l.b16 %v214
      %v368 = vunpack.c.h.b16 %v214
      %v369 = vunpack.c.l.b16 %v215
      %v370 = vunpack.c.h.b16 %v215
      %v371 = vunpack.c.l.b16 %v216
      %v372 = vunpack.c.h.b16 %v216
      %v373 = vunpack.c.l.b16 %v217
      %v374 = vunpack.c.h.b16 %v217
      %v375 = vpack.c.b16 %v369, %v367
      %v376 = vpack.c.b16 %v370, %v368
      %v377 = vpack.c.b16 %v373, %v371
      %v378 = vpack.c.b16 %v374, %v372
      %vm381 = vcmask 154624
      %v383 = vsel %vm381, %v376, 0
      %v386 = vsel %vm381, %v378, 0
      %v388 = vsel %vm294, 4294967295, 65535
      %v389 = vsel %vm243, %v388, 0
      %v391 = vand.u32 %v342, %v389
      %393 = vmatprep.subr.bf16.mxu0 0
      %394 = vmatpush1.bf16.msra.mxu0 %v340
      %395 = vmatprep.subr.bf16.mxu0 0
      %396 = vmatpush1.bf16.msra.mxu0 %v339
      %397 = vmatprep.subr.bf16.mxu0 0
      %398 = vmatpush1.bf16.msra.mxu0 %v338
      %399 = vmatprep.subr.bf16.mxu0 0
      %400 = vmatpush1.bf16.msra.mxu0 %v337
      %401 = vmatprep.subr.bf16.mxu0 0
      %402 = vmatpush1.bf16.msra.mxu0 %v336
      %403 = vmatprep.subr.bf16.mxu0 0
      %404 = vmatpush1.bf16.msra.mxu0 %v335
      %405 = vmatprep.subr.bf16.mxu0 0
      %406 = vmatpush1.bf16.msra.mxu0 %v334
      %407 = vmatprep.subr.bf16.mxu0 0
      %408 = vmatpush1.bf16.msra.mxu0 %v333
      %409 = vmatprep.subr.bf16.mxu0 0
      %410 = vmatpush2.bf16.msra.mxu0 0
      %411 = vmatprep.subr.bf16.mxu0 0
      %412 = vmatpush2.bf16.msra.mxu0 0
      %413 = vmatprep.subr.bf16.mxu0 0
      %414 = vmatpush2.bf16.msra.mxu0 0
      %415 = vmatprep.subr.bf16.mxu0 0
      %416 = vmatpush2.bf16.msra.mxu0 0
      %417 = vmatprep.subr.bf16.mxu0 0
      %418 = vmatpush2.bf16.msra.mxu0 0
      %419 = vmatprep.subr.bf16.mxu0 0
      %420 = vmatpush2.bf16.msra.mxu0 0
      %421 = vmatprep.subr.bf16.mxu0 0
      %422 = vmatpush2.bf16.msra.mxu0 %v391
      %423 = vmatprep.subr.bf16.mxu0 0
      %424 = vmatpush2.bf16.msra.mxu0 %v341
      %425 = vmatprep.mubr.bf16.mxu0 %v383
      %426 = vmatmul.mubr.bf16.gmra.mxu0 %v375
      %v427 = vpop.f32.mrf.mxu0
      %v428 = vadd.f32 %v346, %v427
      %v429 = vpop.f32.mrf.mxu0
      %v430 = vpop.f32.mrf.mxu0
      %v431 = vadd.f32 %v351, %v430
      %v432 = vpop.f32.mrf.mxu0
      %433 = vmatprep.mubr.bf16.mxu0 %v386
      %434 = vmatmul.mubr.bf16.gmra.mxu0 %v377
      %v435 = vpop.f32.mrf.mxu0
      %v436 = vadd.f32 %v356, %v435
      %v437 = vpop.f32.mrf.mxu0
      %v438 = vpop.f32.mrf.mxu0
      %v439 = vadd.f32 %v361, %v438
      %v440 = vpop.f32.mrf.mxu0
      %441 = vdwg.mxu0
      %v442 = vtanh.pop %v428
      %v443 = vtanh.pop %v431
      %v444 = vtanh.pop %v436
      %v445 = vtanh.pop %v439
      %vm446 = vcmask 113664
      %447 = vst.msk [vmem:[%s194] sm:$0xff] %vm446, %v442
      %448 = vst.msk [vmem:[%s194 + $0x8] sm:$0xff] %vm446, %v443
      %449 = vst.msk [vmem:[%s194 + $0x10] sm:$0xff] %vm446, %v444
      %450 = vst.msk [vmem:[%s194 + $0x18] sm:$0xff] %vm446, %v445
      %454 = vrot.lane.b32.xlu0 %v244, 127
      %v455 = vpop.permute.xlu0 %454
      %456 = vrot.lane.b32.xlu0 %v246, 127
      %v457 = vpop.permute.xlu0 %456
      %458 = vrot.lane.b32.xlu0 %v248, 127
      %v459 = vpop.permute.xlu0 %458
      %460 = vrot.lane.b32.xlu0 %v247, 127
      %v461 = vpop.permute.xlu0 %460
      %466 = vrot.lane.b32.xlu0 %v261, 126
      %v467 = vpop.permute.xlu0 %466
      %468 = vrot.lane.b32.xlu0 %v263, 126
      %v469 = vpop.permute.xlu0 %468
      %470 = vrot.lane.b32.xlu0 %v262, 126
      %v471 = vpop.permute.xlu0 %470
      %475 = vrot.lane.b32.xlu0 %v277, 125
      %v476 = vpop.permute.xlu0 %475
      %477 = vrot.lane.b32.xlu0 %v279, 125
      %v478 = vpop.permute.xlu0 %477
      %479 = vrot.lane.b32.xlu0 %v281, 125
      %v480 = vpop.permute.xlu0 %479
      %481 = vrot.lane.b32.xlu0 %v280, 125
      %v482 = vpop.permute.xlu0 %481
      %487 = vrot.lane.b32.xlu0 %v295, 124
      %v488 = vpop.permute.xlu0 %487
      %489 = vrot.lane.b32.xlu0 %v297, 124
      %v490 = vpop.permute.xlu0 %489
      %491 = vrot.lane.b32.xlu0 %v299, 124
      %v492 = vpop.permute.xlu0 %491
      %493 = vrot.lane.b32.xlu0 %v298, 124
      %v494 = vpop.permute.xlu0 %493
      %499 = vrot.lane.b32.xlu0 %v312, 123
      %v500 = vpop.permute.xlu0 %499
      %501 = vrot.lane.b32.xlu0 %v314, 123
      %v502 = vpop.permute.xlu0 %501
      %503 = vrot.lane.b32.xlu0 %v313, 123
      %v504 = vpop.permute.xlu0 %503
      %vm508 = vcmask 1042432
      %v509 = vrot.slane %v208, 5
      %v510 = vrot.slane %v209, 5
      %v511 = vsel %vm508, %v509, %v510
      %v512 = vrot.slane %v210, 5
      %v513 = vsel %vm508, %v510, %v512
      %514 = vrot.lane.b32.xlu0 %v509, 122
      %v515 = vpop.permute.xlu0 %514
      %516 = vrot.lane.b32.xlu0 %v511, 122
      %v517 = vpop.permute.xlu0 %516
      %518 = vrot.lane.b32.xlu0 %v513, 122
      %v519 = vpop.permute.xlu0 %518
      %520 = vrot.lane.b32.xlu0 %v512, 122
      %v521 = vpop.permute.xlu0 %520
      %v526 = vsel %vm225, %v229, %v455
      %v527 = vsel %vm243, %v461, %v467
      %v528 = vsel %vm258, %v471, %v476
      %v529 = vsel %vm276, %v482, %v488
      %v530 = vsel %vm294, %v494, %v500
      %v531 = vsel %vm309, %v504, %v515
      %v532 = vpack.c.bf16 %v230, %v228
      %v533 = vpack.c.bf16 %v457, %v526
      %v534 = vpack.c.bf16 %v527, %v459
      %v535 = vpack.c.bf16 %v528, %v469
      %v536 = vpack.c.bf16 %v480, %v478
      %v537 = vpack.c.bf16 %v490, %v529
      %v538 = vpack.c.bf16 %v530, %v492
      %v539 = vpack.c.bf16 %v531, %v502
      %v540 = vpack.c.bf16 %v519, %v517
      %v541 = vpack.c.bf16 %v521, %v521
      %v543 = vand.u32 %v541, %v389
      %545 = vmatprep.subr.bf16.mxu0 0
      %546 = vmatpush1.bf16.msra.mxu0 %v539
      %547 = vmatprep.subr.bf16.mxu0 0
      %548 = vmatpush1.bf16.msra.mxu0 %v538
      %549 = vmatprep.subr.bf16.mxu0 0
      %550 = vmatpush1.bf16.msra.mxu0 %v537
      %551 = vmatprep.subr.bf16.mxu0 0
      %552 = vmatpush1.bf16.msra.mxu0 %v536
      %553 = vmatprep.subr.bf16.mxu0 0
      %554 = vmatpush1.bf16.msra.mxu0 %v535
      %555 = vmatprep.subr.bf16.mxu0 0
      %556 = vmatpush1.bf16.msra.mxu0 %v534
      %557 = vmatprep.subr.bf16.mxu0 0
      %558 = vmatpush1.bf16.msra.mxu0 %v533
      %559 = vmatprep.subr.bf16.mxu0 0
      %560 = vmatpush1.bf16.msra.mxu0 %v532
      %561 = vmatprep.subr.bf16.mxu0 0
      %562 = vmatpush2.bf16.msra.mxu0 0
      %563 = vmatprep.subr.bf16.mxu0 0
      %564 = vmatpush2.bf16.msra.mxu0 0
      %565 = vmatprep.subr.bf16.mxu0 0
      %566 = vmatpush2.bf16.msra.mxu0 0
      %567 = vmatprep.subr.bf16.mxu0 0
      %568 = vmatpush2.bf16.msra.mxu0 0
      %569 = vmatprep.subr.bf16.mxu0 0
      %570 = vmatpush2.bf16.msra.mxu0 0
      %571 = vmatprep.subr.bf16.mxu0 0
      %572 = vmatpush2.bf16.msra.mxu0 0
      %573 = vmatprep.subr.bf16.mxu0 0
      %574 = vmatpush2.bf16.msra.mxu0 %v543
      %575 = vmatprep.subr.bf16.mxu0 0
      %576 = vmatpush2.bf16.msra.mxu0 %v540
      %577 = vmatprep.mubr.bf16.mxu0 %v383
      %578 = vmatmul.mubr.bf16.gmra.mxu0 %v375
      %v579 = vpop.f32.mrf.mxu0
      %v580 = vadd.f32 %v346, %v579
      %v581 = vpop.f32.mrf.mxu0
      %v582 = vpop.f32.mrf.mxu0
      %v583 = vadd.f32 %v351, %v582
      %v584 = vpop.f32.mrf.mxu0
      %585 = vmatprep.mubr.bf16.mxu0 %v386
      %586 = vmatmul.mubr.bf16.gmra.mxu0 %v377
      %v587 = vpop.f32.mrf.mxu0
      %v588 = vadd.f32 %v356, %v587
      %v589 = vpop.f32.mrf.mxu0
      %v590 = vpop.f32.mrf.mxu0
      %v591 = vadd.f32 %v361, %v590
      %v592 = vpop.f32.mrf.mxu0
      %593 = vdwg.mxu0
      %v594 = vtanh.pop %v580
      %v595 = vtanh.pop %v583
      %v596 = vtanh.pop %v588
      %v597 = vtanh.pop %v591
      %s598 = scalar_lea.vmem %s194, 32
      %599 = vst.msk [vmem:[%s598] sm:$0xff] %vm446, %v594
      %600 = vst.msk [vmem:[%s598 + $0x8] sm:$0xff] %vm446, %v595
      %601 = vst.msk [vmem:[%s598 + $0x10] sm:$0xff] %vm446, %v596
      %602 = vst.msk [vmem:[%s598 + $0x18] sm:$0xff] %vm446, %v597
      %v604 = vrot.slane %v211, 6
      %v605 = vsel %vm243, %v247, %v604
      %v609 = vrot.slane %v211, 1
      %v610 = vsel %vm258, %v262, %v609
      %611 = vrot.lane.b32.xlu0 %v261, 127
      %v612 = vpop.permute.xlu0 %611
      %613 = vrot.lane.b32.xlu0 %v263, 127
      %v614 = vpop.permute.xlu0 %613
      %615 = vrot.lane.b32.xlu0 %v610, 127
      %v616 = vpop.permute.xlu0 %615
      %617 = vrot.lane.b32.xlu0 %v609, 127
      %v618 = vpop.permute.xlu0 %617
      %v623 = vrot.slane %v211, 4
      %v624 = vsel %vm276, %v280, %v623
      %625 = vrot.lane.b32.xlu0 %v279, 126
      %v626 = vpop.permute.xlu0 %625
      %627 = vrot.lane.b32.xlu0 %v281, 126
      %v628 = vpop.permute.xlu0 %627
      %629 = vrot.lane.b32.xlu0 %v624, 126
      %v630 = vpop.permute.xlu0 %629
      %v634 = vrot.slane %v211, 7
      %v635 = vsel %vm294, %v298, %v634
      %636 = vrot.lane.b32.xlu0 %v295, 125
      %v637 = vpop.permute.xlu0 %636
      %638 = vrot.lane.b32.xlu0 %v297, 125
      %v639 = vpop.permute.xlu0 %638
      %640 = vrot.lane.b32.xlu0 %v299, 125
      %v641 = vpop.permute.xlu0 %640
      %642 = vrot.lane.b32.xlu0 %v635, 125
      %v643 = vpop.permute.xlu0 %642
      %v648 = vrot.slane %v211, 2
      %v649 = vsel %vm309, %v313, %v648
      %650 = vrot.lane.b32.xlu0 %v312, 124
      %v651 = vpop.permute.xlu0 %650
      %652 = vrot.lane.b32.xlu0 %v314, 124
      %v653 = vpop.permute.xlu0 %652
      %654 = vrot.lane.b32.xlu0 %v649, 124
      %v655 = vpop.permute.xlu0 %654
      %656 = vrot.lane.b32.xlu0 %v648, 124
      %v657 = vpop.permute.xlu0 %656
      %v662 = vrot.slane %v211, 5
      %v663 = vsel %vm508, %v512, %v662
      %664 = vrot.lane.b32.xlu0 %v511, 123
      %v665 = vpop.permute.xlu0 %664
      %666 = vrot.lane.b32.xlu0 %v513, 123
      %v667 = vpop.permute.xlu0 %666
      %668 = vrot.lane.b32.xlu0 %v663, 123
      %v669 = vpop.permute.xlu0 %668
      %673 = vrot.lane.b32.xlu0 %v208, 122
      %v674 = vpop.permute.xlu0 %673
      %675 = vrot.lane.b32.xlu0 %v209, 122
      %v676 = vpop.permute.xlu0 %675
      %677 = vrot.lane.b32.xlu0 %v210, 122
      %v678 = vpop.permute.xlu0 %677
      %679 = vrot.lane.b32.xlu0 %v211, 122
      %v680 = vpop.permute.xlu0 %679
      %v685 = vsel %vm225, %v605, %v612
      %v686 = vsel %vm243, %v618, %v626
      %v687 = vsel %vm258, %v630, %v637
      %v688 = vsel %vm276, %v643, %v651
      %v689 = vsel %vm294, %v657, %v665
      %v690 = vsel %vm309, %v669, %v674
      %v691 = vpack.c.bf16 %v248, %v246
      %v692 = vpack.c.bf16 %v614, %v685
      %v693 = vpack.c.bf16 %v686, %v616
      %v694 = vpack.c.bf16 %v687, %v628
      %v695 = vpack.c.bf16 %v641, %v639
      %v696 = vpack.c.bf16 %v653, %v688
      %v697 = vpack.c.bf16 %v689, %v655
      %v698 = vpack.c.bf16 %v690, %v667
      %v699 = vpack.c.bf16 %v678, %v676
      %v700 = vpack.c.bf16 %v680, %v680
      %v702 = vand.u32 %v700, %v389
      %704 = vmatprep.subr.bf16.mxu0 0
      %705 = vmatpush1.bf16.msra.mxu0 %v698
      %706 = vmatprep.subr.bf16.mxu0 0
      %707 = vmatpush1.bf16.msra.mxu0 %v697
      %708 = vmatprep.subr.bf16.mxu0 0
      %709 = vmatpush1.bf16.msra.mxu0 %v696
      %710 = vmatprep.subr.bf16.mxu0 0
      %711 = vmatpush1.bf16.msra.mxu0 %v695
      %712 = vmatprep.subr.bf16.mxu0 0
      %713 = vmatpush1.bf16.msra.mxu0 %v694
      %714 = vmatprep.subr.bf16.mxu0 0
      %715 = vmatpush1.bf16.msra.mxu0 %v693
      %716 = vmatprep.subr.bf16.mxu0 0
      %717 = vmatpush1.bf16.msra.mxu0 %v692
      %718 = vmatprep.subr.bf16.mxu0 0
      %719 = vmatpush1.bf16.msra.mxu0 %v691
      %720 = vmatprep.subr.bf16.mxu0 0
      %721 = vmatpush2.bf16.msra.mxu0 0
      %722 = vmatprep.subr.bf16.mxu0 0
      %723 = vmatpush2.bf16.msra.mxu0 0
      %724 = vmatprep.subr.bf16.mxu0 0
      %725 = vmatpush2.bf16.msra.mxu0 0
      %726 = vmatprep.subr.bf16.mxu0 0
      %727 = vmatpush2.bf16.msra.mxu0 0
      %728 = vmatprep.subr.bf16.mxu0 0
      %729 = vmatpush2.bf16.msra.mxu0 0
      %730 = vmatprep.subr.bf16.mxu0 0
      %731 = vmatpush2.bf16.msra.mxu0 0
      %732 = vmatprep.subr.bf16.mxu0 0
      %733 = vmatpush2.bf16.msra.mxu0 %v702
      %734 = vmatprep.subr.bf16.mxu0 0
      %735 = vmatpush2.bf16.msra.mxu0 %v699
      %736 = vmatprep.mubr.bf16.mxu0 %v383
      %737 = vmatmul.mubr.bf16.gmra.mxu0 %v375
      %v738 = vpop.f32.mrf.mxu0
      %v739 = vadd.f32 %v346, %v738
      %v740 = vpop.f32.mrf.mxu0
      %v741 = vpop.f32.mrf.mxu0
      %v742 = vadd.f32 %v351, %v741
      %v743 = vpop.f32.mrf.mxu0
      %744 = vmatprep.mubr.bf16.mxu0 %v386
      %745 = vmatmul.mubr.bf16.gmra.mxu0 %v377
      %v746 = vpop.f32.mrf.mxu0
      %v747 = vadd.f32 %v356, %v746
      %v748 = vpop.f32.mrf.mxu0
      %v749 = vpop.f32.mrf.mxu0
      %v750 = vadd.f32 %v361, %v749
      %v751 = vpop.f32.mrf.mxu0
      %752 = vdwg.mxu0
      %v753 = vtanh.pop %v739
      %v754 = vtanh.pop %v742
      %v755 = vtanh.pop %v747
      %v756 = vtanh.pop %v750
      %s757 = scalar_lea.vmem %s194, 64
      %758 = vst.msk [vmem:[%s757] sm:$0xff] %vm446, %v753
      %759 = vst.msk [vmem:[%s757 + $0x8] sm:$0xff] %vm446, %v754
      %760 = vst.msk [vmem:[%s757 + $0x10] sm:$0xff] %vm446, %v755
      %761 = vst.msk [vmem:[%s757 + $0x18] sm:$0xff] %vm446, %v756
      %765 = vrot.lane.b32.xlu0 %v278, 127
      %v766 = vpop.permute.xlu0 %765
      %767 = vrot.lane.b32.xlu0 %v281, 127
      %v768 = vpop.permute.xlu0 %767
      %769 = vrot.lane.b32.xlu0 %v624, 127
      %v770 = vpop.permute.xlu0 %769
      %771 = vrot.lane.b32.xlu0 %v623, 127
      %v772 = vpop.permute.xlu0 %771
      %777 = vrot.lane.b32.xlu0 %v296, 126
      %v778 = vpop.permute.xlu0 %777
      %779 = vrot.lane.b32.xlu0 %v299, 126
      %v780 = vpop.permute.xlu0 %779
      %781 = vrot.lane.b32.xlu0 %v635, 126
      %v782 = vpop.permute.xlu0 %781
      %786 = vrot.lane.b32.xlu0 %v311, 125
      %v787 = vpop.permute.xlu0 %786
      %788 = vrot.lane.b32.xlu0 %v314, 125
      %v789 = vpop.permute.xlu0 %788
      %790 = vrot.lane.b32.xlu0 %v649, 125
      %v791 = vpop.permute.xlu0 %790
      %792 = vrot.lane.b32.xlu0 %v648, 125
      %v793 = vpop.permute.xlu0 %792
      %798 = vrot.lane.b32.xlu0 %v510, 124
      %v799 = vpop.permute.xlu0 %798
      %800 = vrot.lane.b32.xlu0 %v513, 124
      %v801 = vpop.permute.xlu0 %800
      %802 = vrot.lane.b32.xlu0 %v663, 124
      %v803 = vpop.permute.xlu0 %802
      %804 = vrot.lane.b32.xlu0 %v662, 124
      %v805 = vpop.permute.xlu0 %804
      %810 = vrot.lane.b32.xlu0 %v209, 123
      %v811 = vpop.permute.xlu0 %810
      %812 = vrot.lane.b32.xlu0 %v210, 123
      %v813 = vpop.permute.xlu0 %812
      %814 = vrot.lane.b32.xlu0 %v211, 123
      %v815 = vpop.permute.xlu0 %814
      %v819 = vrot.slane %v211, 3
      %v820 = vsel %vm225, %v229, %v819
      %821 = vrot.lane.b32.xlu0 %v227, 122
      %v822 = vpop.permute.xlu0 %821
      %823 = vrot.lane.b32.xlu0 %v230, 122
      %v824 = vpop.permute.xlu0 %823
      %825 = vrot.lane.b32.xlu0 %v820, 122
      %v826 = vpop.permute.xlu0 %825
      %827 = vrot.lane.b32.xlu0 %v819, 122
      %v828 = vpop.permute.xlu0 %827
      %v833 = vsel %vm225, %v609, %v766
      %v834 = vsel %vm243, %v772, %v778
      %v835 = vsel %vm258, %v782, %v787
      %v836 = vsel %vm276, %v793, %v799
      %v837 = vsel %vm294, %v805, %v811
      %v838 = vsel %vm309, %v815, %v822
      %v839 = vpack.c.bf16 %v610, %v263
      %v840 = vpack.c.bf16 %v768, %v833
      %v841 = vpack.c.bf16 %v834, %v770
      %v842 = vpack.c.bf16 %v835, %v780
      %v843 = vpack.c.bf16 %v791, %v789
      %v844 = vpack.c.bf16 %v801, %v836
      %v845 = vpack.c.bf16 %v837, %v803
      %v846 = vpack.c.bf16 %v838, %v813
      %v847 = vpack.c.bf16 %v826, %v824
      %v848 = vpack.c.bf16 %v828, %v828
      %v850 = vand.u32 %v848, %v389
      %852 = vmatprep.subr.bf16.mxu0 0
      %853 = vmatpush1.bf16.msra.mxu0 %v846
      %854 = vmatprep.subr.bf16.mxu0 0
      %855 = vmatpush1.bf16.msra.mxu0 %v845
      %856 = vmatprep.subr.bf16.mxu0 0
      %857 = vmatpush1.bf16.msra.mxu0 %v844
      %858 = vmatprep.subr.bf16.mxu0 0
      %859 = vmatpush1.bf16.msra.mxu0 %v843
      %860 = vmatprep.subr.bf16.mxu0 0
      %861 = vmatpush1.bf16.msra.mxu0 %v842
      %862 = vmatprep.subr.bf16.mxu0 0
      %863 = vmatpush1.bf16.msra.mxu0 %v841
      %864 = vmatprep.subr.bf16.mxu0 0
      %865 = vmatpush1.bf16.msra.mxu0 %v840
      %866 = vmatprep.subr.bf16.mxu0 0
      %867 = vmatpush1.bf16.msra.mxu0 %v839
      %868 = vmatprep.subr.bf16.mxu0 0
      %869 = vmatpush2.bf16.msra.mxu0 0
      %870 = vmatprep.subr.bf16.mxu0 0
      %871 = vmatpush2.bf16.msra.mxu0 0
      %872 = vmatprep.subr.bf16.mxu0 0
      %873 = vmatpush2.bf16.msra.mxu0 0
      %874 = vmatprep.subr.bf16.mxu0 0
      %875 = vmatpush2.bf16.msra.mxu0 0
      %876 = vmatprep.subr.bf16.mxu0 0
      %877 = vmatpush2.bf16.msra.mxu0 0
      %878 = vmatprep.subr.bf16.mxu0 0
      %879 = vmatpush2.bf16.msra.mxu0 0
      %880 = vmatprep.subr.bf16.mxu0 0
      %881 = vmatpush2.bf16.msra.mxu0 %v850
      %882 = vmatprep.subr.bf16.mxu0 0
      %883 = vmatpush2.bf16.msra.mxu0 %v847
      %884 = vmatprep.mubr.bf16.mxu0 %v383
      %885 = vmatmul.mubr.bf16.gmra.mxu0 %v375
      %v886 = vpop.f32.mrf.mxu0
      %v887 = vadd.f32 %v346, %v886
      %v888 = vpop.f32.mrf.mxu0
      %v889 = vpop.f32.mrf.mxu0
      %v890 = vadd.f32 %v351, %v889
      %v891 = vpop.f32.mrf.mxu0
      %892 = vmatprep.mubr.bf16.mxu0 %v386
      %893 = vmatmul.mubr.bf16.gmra.mxu0 %v377
      %v894 = vpop.f32.mrf.mxu0
      %v895 = vadd.f32 %v356, %v894
      %v896 = vpop.f32.mrf.mxu0
      %v897 = vpop.f32.mrf.mxu0
      %v898 = vadd.f32 %v361, %v897
      %v899 = vpop.f32.mrf.mxu0
      %900 = vdwg.mxu0
      %v901 = vtanh.pop %v887
      %v902 = vtanh.pop %v890
      %v903 = vtanh.pop %v895
      %v904 = vtanh.pop %v898
      %s905 = scalar_lea.vmem %s194, 96
      %906 = vst.msk [vmem:[%s905] sm:$0xff] %vm446, %v901
      %907 = vst.msk [vmem:[%s905 + $0x8] sm:$0xff] %vm446, %v902
      %908 = vst.msk [vmem:[%s905 + $0x10] sm:$0xff] %vm446, %v903
      %909 = vst.msk [vmem:[%s905 + $0x18] sm:$0xff] %vm446, %v904
      %v911 = vrot.slane %v212, 4
      %v912 = vsel %vm276, %v623, %v911
      %v916 = vrot.slane %v212, 7
      %v917 = vsel %vm294, %v634, %v916
      %918 = vrot.lane.b32.xlu0 %v296, 127
      %v919 = vpop.permute.xlu0 %918
      %920 = vrot.lane.b32.xlu0 %v299, 127
      %v921 = vpop.permute.xlu0 %920
      %922 = vrot.lane.b32.xlu0 %v635, 127
      %v923 = vpop.permute.xlu0 %922
      %924 = vrot.lane.b32.xlu0 %v917, 127
      %v925 = vpop.permute.xlu0 %924
      %v930 = vrot.slane %v212, 2
      %v931 = vsel %vm309, %v648, %v930
      %932 = vrot.lane.b32.xlu0 %v314, 126
      %v933 = vpop.permute.xlu0 %932
      %934 = vrot.lane.b32.xlu0 %v649, 126
      %v935 = vpop.permute.xlu0 %934
      %936 = vrot.lane.b32.xlu0 %v931, 126
      %v937 = vpop.permute.xlu0 %936
      %v941 = vrot.slane %v212, 5
      %v942 = vsel %vm508, %v662, %v941
      %943 = vrot.lane.b32.xlu0 %v510, 125
      %v944 = vpop.permute.xlu0 %943
      %945 = vrot.lane.b32.xlu0 %v513, 125
      %v946 = vpop.permute.xlu0 %945
      %947 = vrot.lane.b32.xlu0 %v663, 125
      %v948 = vpop.permute.xlu0 %947
      %949 = vrot.lane.b32.xlu0 %v942, 125
      %v950 = vpop.permute.xlu0 %949
      %955 = vrot.lane.b32.xlu0 %v209, 124
      %v956 = vpop.permute.xlu0 %955
      %957 = vrot.lane.b32.xlu0 %v210, 124
      %v958 = vpop.permute.xlu0 %957
      %959 = vrot.lane.b32.xlu0 %v211, 124
      %v960 = vpop.permute.xlu0 %959
      %961 = vrot.lane.b32.xlu0 %v212, 124
      %v962 = vpop.permute.xlu0 %961
      %v967 = vrot.slane %v212, 3
      %v968 = vsel %vm225, %v819, %v967
      %969 = vrot.lane.b32.xlu0 %v230, 123
      %v970 = vpop.permute.xlu0 %969
      %971 = vrot.lane.b32.xlu0 %v820, 123
      %v972 = vpop.permute.xlu0 %971
      %973 = vrot.lane.b32.xlu0 %v968, 123
      %v974 = vpop.permute.xlu0 %973
      %v978 = vrot.slane %v212, 6
      %v979 = vsel %vm243, %v604, %v978
      %980 = vrot.lane.b32.xlu0 %v245, 122
      %v981 = vpop.permute.xlu0 %980
      %982 = vrot.lane.b32.xlu0 %v248, 122
      %v983 = vpop.permute.xlu0 %982
      %984 = vrot.lane.b32.xlu0 %v605, 122
      %v985 = vpop.permute.xlu0 %984
      %986 = vrot.lane.b32.xlu0 %v979, 122
      %v987 = vpop.permute.xlu0 %986
      %v992 = vsel %vm225, %v912, %v919
      %v993 = vsel %vm243, %v925, %v933
      %v994 = vsel %vm258, %v937, %v944
      %v995 = vsel %vm276, %v950, %v956
      %v996 = vsel %vm294, %v962, %v970
      %v997 = vsel %vm309, %v974, %v981
      %v998 = vpack.c.bf16 %v624, %v281
      %v999 = vpack.c.bf16 %v921, %v992
      %v1000 = vpack.c.bf16 %v993, %v923
      %v1001 = vpack.c.bf16 %v994, %v935
      %v1002 = vpack.c.bf16 %v948, %v946
      %v1003 = vpack.c.bf16 %v958, %v995
      %v1004 = vpack.c.bf16 %v996, %v960
      %v1005 = vpack.c.bf16 %v997, %v972
      %v1006 = vpack.c.bf16 %v985, %v983
      %v1007 = vpack.c.bf16 %v987, %v987
      %v1009 = vand.u32 %v1007, %v389
      %1011 = vmatprep.subr.bf16.mxu0 0
      %1012 = vmatpush1.bf16.msra.mxu0 %v1005
      %1013 = vmatprep.subr.bf16.mxu0 0
      %1014 = vmatpush1.bf16.msra.mxu0 %v1004
      %1015 = vmatprep.subr.bf16.mxu0 0
      %1016 = vmatpush1.bf16.msra.mxu0 %v1003
      %1017 = vmatprep.subr.bf16.mxu0 0
      %1018 = vmatpush1.bf16.msra.mxu0 %v1002
      %1019 = vmatprep.subr.bf16.mxu0 0
      %1020 = vmatpush1.bf16.msra.mxu0 %v1001
      %1021 = vmatprep.subr.bf16.mxu0 0
      %1022 = vmatpush1.bf16.msra.mxu0 %v1000
      %1023 = vmatprep.subr.bf16.mxu0 0
      %1024 = vmatpush1.bf16.msra.mxu0 %v999
      %1025 = vmatprep.subr.bf16.mxu0 0
      %1026 = vmatpush1.bf16.msra.mxu0 %v998
      %1027 = vmatprep.subr.bf16.mxu0 0
      %1028 = vmatpush2.bf16.msra.mxu0 0
      %1029 = vmatprep.subr.bf16.mxu0 0
      %1030 = vmatpush2.bf16.msra.mxu0 0
      %1031 = vmatprep.subr.bf16.mxu0 0
      %1032 = vmatpush2.bf16.msra.mxu0 0
      %1033 = vmatprep.subr.bf16.mxu0 0
      %1034 = vmatpush2.bf16.msra.mxu0 0
      %1035 = vmatprep.subr.bf16.mxu0 0
      %1036 = vmatpush2.bf16.msra.mxu0 0
      %1037 = vmatprep.subr.bf16.mxu0 0
      %1038 = vmatpush2.bf16.msra.mxu0 0
      %1039 = vmatprep.subr.bf16.mxu0 0
      %1040 = vmatpush2.bf16.msra.mxu0 %v1009
      %1041 = vmatprep.subr.bf16.mxu0 0
      %1042 = vmatpush2.bf16.msra.mxu0 %v1006
      %1043 = vmatprep.mubr.bf16.mxu0 %v383
      %1044 = vmatmul.mubr.bf16.gmra.mxu0 %v375
      %v1045 = vpop.f32.mrf.mxu0
      %v1046 = vadd.f32 %v346, %v1045
      %v1047 = vpop.f32.mrf.mxu0
      %v1048 = vpop.f32.mrf.mxu0
      %v1049 = vadd.f32 %v351, %v1048
      %v1050 = vpop.f32.mrf.mxu0
      %1051 = vmatprep.mubr.bf16.mxu0 %v386
      %1052 = vmatmul.mubr.bf16.gmra.mxu0 %v377
      %v1053 = vpop.f32.mrf.mxu0
      %v1054 = vadd.f32 %v356, %v1053
      %v1055 = vpop.f32.mrf.mxu0
      %v1056 = vpop.f32.mrf.mxu0
      %v1057 = vadd.f32 %v361, %v1056
      %v1058 = vpop.f32.mrf.mxu0
      %1059 = vdwg.mxu0
      %v1060 = vtanh.pop %v1046
      %v1061 = vtanh.pop %v1049
      %v1062 = vtanh.pop %v1054
      %v1063 = vtanh.pop %v1057
      %s1064 = scalar_lea.vmem %s194, 128
      %1065 = vst.msk [vmem:[%s1064] sm:$0xff] %vm446, %v1060
      %1066 = vst.msk [vmem:[%s1064 + $0x8] sm:$0xff] %vm446, %v1061
      %1067 = vst.msk [vmem:[%s1064 + $0x10] sm:$0xff] %vm446, %v1062
      %1068 = vst.msk [vmem:[%s1064 + $0x18] sm:$0xff] %vm446, %v1063
      %1072 = vrot.lane.b32.xlu0 %v314, 127
      %v1073 = vpop.permute.xlu0 %1072
      %1074 = vrot.lane.b32.xlu0 %v649, 127
      %v1075 = vpop.permute.xlu0 %1074
      %1076 = vrot.lane.b32.xlu0 %v931, 127
      %v1077 = vpop.permute.xlu0 %1076
      %1078 = vrot.lane.b32.xlu0 %v930, 127
      %v1079 = vpop.permute.xlu0 %1078
      %1084 = vrot.lane.b32.xlu0 %v513, 126
      %v1085 = vpop.permute.xlu0 %1084
      %1086 = vrot.lane.b32.xlu0 %v663, 126
      %v1087 = vpop.permute.xlu0 %1086
      %1088 = vrot.lane.b32.xlu0 %v942, 126
      %v1089 = vpop.permute.xlu0 %1088
      %1093 = vrot.lane.b32.xlu0 %v209, 125
      %v1094 = vpop.permute.xlu0 %1093
      %1095 = vrot.lane.b32.xlu0 %v210, 125
      %v1096 = vpop.permute.xlu0 %1095
      %1097 = vrot.lane.b32.xlu0 %v211, 125
      %v1098 = vpop.permute.xlu0 %1097
      %1099 = vrot.lane.b32.xlu0 %v212, 125
      %v1100 = vpop.permute.xlu0 %1099
      %1105 = vrot.lane.b32.xlu0 %v230, 124
      %v1106 = vpop.permute.xlu0 %1105
      %1107 = vrot.lane.b32.xlu0 %v820, 124
      %v1108 = vpop.permute.xlu0 %1107
      %1109 = vrot.lane.b32.xlu0 %v968, 124
      %v1110 = vpop.permute.xlu0 %1109
      %1111 = vrot.lane.b32.xlu0 %v967, 124
      %v1112 = vpop.permute.xlu0 %1111
      %1117 = vrot.lane.b32.xlu0 %v248, 123
      %v1118 = vpop.permute.xlu0 %1117
      %1119 = vrot.lane.b32.xlu0 %v605, 123
      %v1120 = vpop.permute.xlu0 %1119
      %1121 = vrot.lane.b32.xlu0 %v979, 123
      %v1122 = vpop.permute.xlu0 %1121
      %v1126 = vrot.slane %v212, 1
      %v1127 = vsel %vm258, %v609, %v1126
      %1128 = vrot.lane.b32.xlu0 %v263, 122
      %v1129 = vpop.permute.xlu0 %1128
      %1130 = vrot.lane.b32.xlu0 %v610, 122
      %v1131 = vpop.permute.xlu0 %1130
      %1132 = vrot.lane.b32.xlu0 %v1127, 122
      %v1133 = vpop.permute.xlu0 %1132
      %1134 = vrot.lane.b32.xlu0 %v1126, 122
      %v1135 = vpop.permute.xlu0 %1134
      %v1140 = vsel %vm225, %v917, %v1073
      %v1141 = vsel %vm243, %v1079, %v1085
      %v1142 = vsel %vm258, %v1089, %v1094
      %v1143 = vsel %vm276, %v1100, %v1106
      %v1144 = vsel %vm294, %v1112, %v1118
      %v1145 = vsel %vm309, %v1122, %v1129
      %v1146 = vpack.c.bf16 %v635, %v299
      %v1147 = vpack.c.bf16 %v1075, %v1140
      %v1148 = vpack.c.bf16 %v1141, %v1077
      %v1149 = vpack.c.bf16 %v1142, %v1087
      %v1150 = vpack.c.bf16 %v1098, %v1096
      %v1151 = vpack.c.bf16 %v1108, %v1143
      %v1152 = vpack.c.bf16 %v1144, %v1110
      %v1153 = vpack.c.bf16 %v1145, %v1120
      %v1154 = vpack.c.bf16 %v1133, %v1131
      %v1155 = vpack.c.bf16 %v1135, %v1135
      %v1157 = vand.u32 %v1155, %v389
      %1159 = vmatprep.subr.bf16.mxu0 0
      %1160 = vmatpush1.bf16.msra.mxu0 %v1153
      %1161 = vmatprep.subr.bf16.mxu0 0
      %1162 = vmatpush1.bf16.msra.mxu0 %v1152
      %1163 = vmatprep.subr.bf16.mxu0 0
      %1164 = vmatpush1.bf16.msra.mxu0 %v1151
      %1165 = vmatprep.subr.bf16.mxu0 0
      %1166 = vmatpush1.bf16.msra.mxu0 %v1150
      %1167 = vmatprep.subr.bf16.mxu0 0
      %1168 = vmatpush1.bf16.msra.mxu0 %v1149
      %1169 = vmatprep.subr.bf16.mxu0 0
      %1170 = vmatpush1.bf16.msra.mxu0 %v1148
      %1171 = vmatprep.subr.bf16.mxu0 0
      %1172 = vmatpush1.bf16.msra.mxu0 %v1147
      %1173 = vmatprep.subr.bf16.mxu0 0
      %1174 = vmatpush1.bf16.msra.mxu0 %v1146
      %1175 = vmatprep.subr.bf16.mxu0 0
      %1176 = vmatpush2.bf16.msra.mxu0 0
      %1177 = vmatprep.subr.bf16.mxu0 0
      %1178 = vmatpush2.bf16.msra.mxu0 0
      %1179 = vmatprep.subr.bf16.mxu0 0
      %1180 = vmatpush2.bf16.msra.mxu0 0
      %1181 = vmatprep.subr.bf16.mxu0 0
      %1182 = vmatpush2.bf16.msra.mxu0 0
      %1183 = vmatprep.subr.bf16.mxu0 0
      %1184 = vmatpush2.bf16.msra.mxu0 0
      %1185 = vmatprep.subr.bf16.mxu0 0
      %1186 = vmatpush2.bf16.msra.mxu0 0
      %1187 = vmatprep.subr.bf16.mxu0 0
      %1188 = vmatpush2.bf16.msra.mxu0 %v1157
      %1189 = vmatprep.subr.bf16.mxu0 0
      %1190 = vmatpush2.bf16.msra.mxu0 %v1154
      %1191 = vmatprep.mubr.bf16.mxu0 %v383
      %1192 = vmatmul.mubr.bf16.gmra.mxu0 %v375
      %v1193 = vpop.f32.mrf.mxu0
      %v1194 = vadd.f32 %v346, %v1193
      %v1195 = vpop.f32.mrf.mxu0
      %v1196 = vpop.f32.mrf.mxu0
      %v1197 = vadd.f32 %v351, %v1196
      %v1198 = vpop.f32.mrf.mxu0
      %1199 = vmatprep.mubr.bf16.mxu0 %v386
      %1200 = vmatmul.mubr.bf16.gmra.mxu0 %v377
      %v1201 = vpop.f32.mrf.mxu0
      %v1202 = vadd.f32 %v356, %v1201
      %v1203 = vpop.f32.mrf.mxu0
      %v1204 = vpop.f32.mrf.mxu0
      %v1205 = vadd.f32 %v361, %v1204
      %v1206 = vpop.f32.mrf.mxu0
      %1207 = vdwg.mxu0
      %v1208 = vtanh.pop %v1194
      %v1209 = vtanh.pop %v1197
      %v1210 = vtanh.pop %v1202
      %v1211 = vtanh.pop %v1205
      %s1212 = scalar_lea.vmem %s194, 160
      %1213 = vst.msk [vmem:[%s1212] sm:$0xff] %vm446, %v1208
      %1214 = vst.msk [vmem:[%s1212 + $0x8] sm:$0xff] %vm446, %v1209
      %1215 = vst.msk [vmem:[%s1212 + $0x10] sm:$0xff] %vm446, %v1210
      %1216 = vst.msk [vmem:[%s1212 + $0x18] sm:$0xff] %vm446, %v1211
      %1220 = vrot.lane.b32.xlu0 %v512, 127
      %v1221 = vpop.permute.xlu0 %1220
      %1222 = vrot.lane.b32.xlu0 %v663, 127
      %v1223 = vpop.permute.xlu0 %1222
      %1224 = vrot.lane.b32.xlu0 %v942, 127
      %v1225 = vpop.permute.xlu0 %1224
      %1226 = vrot.lane.b32.xlu0 %v941, 127
      %v1227 = vpop.permute.xlu0 %1226
      %1232 = vrot.lane.b32.xlu0 %v210, 126
      %v1233 = vpop.permute.xlu0 %1232
      %1234 = vrot.lane.b32.xlu0 %v211, 126
      %v1235 = vpop.permute.xlu0 %1234
      %1236 = vrot.lane.b32.xlu0 %v212, 126
      %v1237 = vpop.permute.xlu0 %1236
      %1241 = vrot.lane.b32.xlu0 %v229, 125
      %v1242 = vpop.permute.xlu0 %1241
      %1243 = vrot.lane.b32.xlu0 %v820, 125
      %v1244 = vpop.permute.xlu0 %1243
      %1245 = vrot.lane.b32.xlu0 %v968, 125
      %v1246 = vpop.permute.xlu0 %1245
      %1247 = vrot.lane.b32.xlu0 %v967, 125
      %v1248 = vpop.permute.xlu0 %1247
      %1253 = vrot.lane.b32.xlu0 %v247, 124
      %v1254 = vpop.permute.xlu0 %1253
      %1255 = vrot.lane.b32.xlu0 %v605, 124
      %v1256 = vpop.permute.xlu0 %1255
      %1257 = vrot.lane.b32.xlu0 %v979, 124
      %v1258 = vpop.permute.xlu0 %1257
      %1259 = vrot.lane.b32.xlu0 %v978, 124
      %v1260 = vpop.permute.xlu0 %1259
      %1265 = vrot.lane.b32.xlu0 %v610, 123
      %v1266 = vpop.permute.xlu0 %1265
      %1267 = vrot.lane.b32.xlu0 %v1127, 123
      %v1268 = vpop.permute.xlu0 %1267
      %1269 = vrot.lane.b32.xlu0 %v1126, 123
      %v1270 = vpop.permute.xlu0 %1269
      %1274 = vrot.lane.b32.xlu0 %v280, 122
      %v1275 = vpop.permute.xlu0 %1274
      %1276 = vrot.lane.b32.xlu0 %v624, 122
      %v1277 = vpop.permute.xlu0 %1276
      %1278 = vrot.lane.b32.xlu0 %v912, 122
      %v1279 = vpop.permute.xlu0 %1278
      %1280 = vrot.lane.b32.xlu0 %v911, 122
      %v1281 = vpop.permute.xlu0 %1280
      %v1286 = vsel %vm225, %v930, %v1221
      %v1287 = vsel %vm243, %v1227, %v1233
      %v1288 = vsel %vm258, %v1237, %v1242
      %v1289 = vsel %vm276, %v1248, %v1254
      %v1290 = vsel %vm294, %v1260, %v1266
      %v1291 = vsel %vm309, %v1270, %v1275
      %v1292 = vpack.c.bf16 %v931, %v649
      %v1293 = vpack.c.bf16 %v1223, %v1286
      %v1294 = vpack.c.bf16 %v1287, %v1225
      %v1295 = vpack.c.bf16 %v1288, %v1235
      %v1296 = vpack.c.bf16 %v1246, %v1244
      %v1297 = vpack.c.bf16 %v1256, %v1289
      %v1298 = vpack.c.bf16 %v1290, %v1258
      %v1299 = vpack.c.bf16 %v1291, %v1268
      %v1300 = vpack.c.bf16 %v1279, %v1277
      %v1301 = vpack.c.bf16 %v1281, %v1281
      %v1303 = vand.u32 %v1301, %v389
      %1305 = vmatprep.subr.bf16.mxu0 0
      %1306 = vmatpush1.bf16.msra.mxu0 %v1299
      %1307 = vmatprep.subr.bf16.mxu0 0
      %1308 = vmatpush1.bf16.msra.mxu0 %v1298
      %1309 = vmatprep.subr.bf16.mxu0 0
      %1310 = vmatpush1.bf16.msra.mxu0 %v1297
      %1311 = vmatprep.subr.bf16.mxu0 0
      %1312 = vmatpush1.bf16.msra.mxu0 %v1296
      %1313 = vmatprep.subr.bf16.mxu0 0
      %1314 = vmatpush1.bf16.msra.mxu0 %v1295
      %1315 = vmatprep.subr.bf16.mxu0 0
      %1316 = vmatpush1.bf16.msra.mxu0 %v1294
      %1317 = vmatprep.subr.bf16.mxu0 0
      %1318 = vmatpush1.bf16.msra.mxu0 %v1293
      %1319 = vmatprep.subr.bf16.mxu0 0
      %1320 = vmatpush1.bf16.msra.mxu0 %v1292
      %1321 = vmatprep.subr.bf16.mxu0 0
      %1322 = vmatpush2.bf16.msra.mxu0 0
      %1323 = vmatprep.subr.bf16.mxu0 0
      %1324 = vmatpush2.bf16.msra.mxu0 0
      %1325 = vmatprep.subr.bf16.mxu0 0
      %1326 = vmatpush2.bf16.msra.mxu0 0
      %1327 = vmatprep.subr.bf16.mxu0 0
      %1328 = vmatpush2.bf16.msra.mxu0 0
      %1329 = vmatprep.subr.bf16.mxu0 0
      %1330 = vmatpush2.bf16.msra.mxu0 0
      %1331 = vmatprep.subr.bf16.mxu0 0
      %1332 = vmatpush2.bf16.msra.mxu0 0
      %1333 = vmatprep.subr.bf16.mxu0 0
      %1334 = vmatpush2.bf16.msra.mxu0 %v1303
      %1335 = vmatprep.subr.bf16.mxu0 0
      %1336 = vmatpush2.bf16.msra.mxu0 %v1300
      %1337 = vmatprep.mubr.bf16.mxu0 %v383
      %1338 = vmatmul.mubr.bf16.gmra.mxu0 %v375
      %v1339 = vpop.f32.mrf.mxu0
      %v1340 = vadd.f32 %v346, %v1339
      %v1341 = vpop.f32.mrf.mxu0
      %v1342 = vpop.f32.mrf.mxu0
      %v1343 = vadd.f32 %v351, %v1342
      %v1344 = vpop.f32.mrf.mxu0
      %1345 = vmatprep.mubr.bf16.mxu0 %v386
      %1346 = vmatmul.mubr.bf16.gmra.mxu0 %v377
      %v1347 = vpop.f32.mrf.mxu0
      %v1348 = vadd.f32 %v356, %v1347
      %v1349 = vpop.f32.mrf.mxu0
      %v1350 = vpop.f32.mrf.mxu0
      %v1351 = vadd.f32 %v361, %v1350
      %v1352 = vpop.f32.mrf.mxu0
      %1353 = vdwg.mxu0
      %v1354 = vtanh.pop %v1340
      %v1355 = vtanh.pop %v1343
      %v1356 = vtanh.pop %v1348
      %v1357 = vtanh.pop %v1351
      %s1358 = scalar_lea.vmem %s194, 192
      %1359 = vst.msk [vmem:[%s1358] sm:$0xff] %vm446, %v1354
      %1360 = vst.msk [vmem:[%s1358 + $0x8] sm:$0xff] %vm446, %v1355
      %1361 = vst.msk [vmem:[%s1358 + $0x10] sm:$0xff] %vm446, %v1356
      %1362 = vst.msk [vmem:[%s1358 + $0x18] sm:$0xff] %vm446, %v1357
      %v1364 = vrot.slane %v213, 5
      %v1365 = vsel %vm508, %v941, %v1364
      %1369 = vrot.lane.b32.xlu0 %v210, 127
      %v1370 = vpop.permute.xlu0 %1369
      %1371 = vrot.lane.b32.xlu0 %v211, 127
      %v1372 = vpop.permute.xlu0 %1371
      %1373 = vrot.lane.b32.xlu0 %v212, 127
      %v1374 = vpop.permute.xlu0 %1373
      %1375 = vrot.lane.b32.xlu0 %v213, 127
      %v1376 = vpop.permute.xlu0 %1375
      %v1381 = vrot.slane %v213, 3
      %v1382 = vsel %vm225, %v967, %v1381
      %1383 = vrot.lane.b32.xlu0 %v820, 126
      %v1384 = vpop.permute.xlu0 %1383
      %1385 = vrot.lane.b32.xlu0 %v968, 126
      %v1386 = vpop.permute.xlu0 %1385
      %1387 = vrot.lane.b32.xlu0 %v1382, 126
      %v1388 = vpop.permute.xlu0 %1387
      %v1392 = vrot.slane %v213, 6
      %v1393 = vsel %vm243, %v978, %v1392
      %1394 = vrot.lane.b32.xlu0 %v247, 125
      %v1395 = vpop.permute.xlu0 %1394
      %1396 = vrot.lane.b32.xlu0 %v605, 125
      %v1397 = vpop.permute.xlu0 %1396
      %1398 = vrot.lane.b32.xlu0 %v979, 125
      %v1399 = vpop.permute.xlu0 %1398
      %1400 = vrot.lane.b32.xlu0 %v1393, 125
      %v1401 = vpop.permute.xlu0 %1400
      %v1406 = vrot.slane %v213, 1
      %v1407 = vsel %vm258, %v1126, %v1406
      %1408 = vrot.lane.b32.xlu0 %v610, 124
      %v1409 = vpop.permute.xlu0 %1408
      %1410 = vrot.lane.b32.xlu0 %v1127, 124
      %v1411 = vpop.permute.xlu0 %1410
      %1412 = vrot.lane.b32.xlu0 %v1407, 124
      %v1413 = vpop.permute.xlu0 %1412
      %1414 = vrot.lane.b32.xlu0 %v1406, 124
      %v1415 = vpop.permute.xlu0 %1414
      %v1420 = vrot.slane %v213, 4
      %v1421 = vsel %vm276, %v911, %v1420
      %1422 = vrot.lane.b32.xlu0 %v624, 123
      %v1423 = vpop.permute.xlu0 %1422
      %1424 = vrot.lane.b32.xlu0 %v912, 123
      %v1425 = vpop.permute.xlu0 %1424
      %1426 = vrot.lane.b32.xlu0 %v1421, 123
      %v1427 = vpop.permute.xlu0 %1426
      %v1431 = vrot.slane %v213, 7
      %v1432 = vsel %vm294, %v916, %v1431
      %1433 = vrot.lane.b32.xlu0 %v298, 122
      %v1434 = vpop.permute.xlu0 %1433
      %1435 = vrot.lane.b32.xlu0 %v635, 122
      %v1436 = vpop.permute.xlu0 %1435
      %1437 = vrot.lane.b32.xlu0 %v917, 122
      %v1438 = vpop.permute.xlu0 %1437
      %1439 = vrot.lane.b32.xlu0 %v1432, 122
      %v1440 = vpop.permute.xlu0 %1439
      %v1445 = vsel %vm225, %v1365, %v1370
      %v1446 = vsel %vm243, %v1376, %v1384
      %v1447 = vsel %vm258, %v1388, %v1395
      %v1448 = vsel %vm276, %v1401, %v1409
      %v1449 = vsel %vm294, %v1415, %v1423
      %v1450 = vsel %vm309, %v1427, %v1434
      %v1451 = vpack.c.bf16 %v942, %v663
      %v1452 = vpack.c.bf16 %v1372, %v1445
      %v1453 = vpack.c.bf16 %v1446, %v1374
      %v1454 = vpack.c.bf16 %v1447, %v1386
      %v1455 = vpack.c.bf16 %v1399, %v1397
      %v1456 = vpack.c.bf16 %v1411, %v1448
      %v1457 = vpack.c.bf16 %v1449, %v1413
      %v1458 = vpack.c.bf16 %v1450, %v1425
      %v1459 = vpack.c.bf16 %v1438, %v1436
      %v1460 = vpack.c.bf16 %v1440, %v1440
      %v1462 = vand.u32 %v1460, %v389
      %1464 = vmatprep.subr.bf16.mxu0 0
      %1465 = vmatpush1.bf16.msra.mxu0 %v1458
      %1466 = vmatprep.subr.bf16.mxu0 0
      %1467 = vmatpush1.bf16.msra.mxu0 %v1457
      %1468 = vmatprep.subr.bf16.mxu0 0
      %1469 = vmatpush1.bf16.msra.mxu0 %v1456
      %1470 = vmatprep.subr.bf16.mxu0 0
      %1471 = vmatpush1.bf16.msra.mxu0 %v1455
      %1472 = vmatprep.subr.bf16.mxu0 0
      %1473 = vmatpush1.bf16.msra.mxu0 %v1454
      %1474 = vmatprep.subr.bf16.mxu0 0
      %1475 = vmatpush1.bf16.msra.mxu0 %v1453
      %1476 = vmatprep.subr.bf16.mxu0 0
      %1477 = vmatpush1.bf16.msra.mxu0 %v1452
      %1478 = vmatprep.subr.bf16.mxu0 0
      %1479 = vmatpush1.bf16.msra.mxu0 %v1451
      %1480 = vmatprep.subr.bf16.mxu0 0
      %1481 = vmatpush2.bf16.msra.mxu0 0
      %1482 = vmatprep.subr.bf16.mxu0 0
      %1483 = vmatpush2.bf16.msra.mxu0 0
      %1484 = vmatprep.subr.bf16.mxu0 0
      %1485 = vmatpush2.bf16.msra.mxu0 0
      %1486 = vmatprep.subr.bf16.mxu0 0
      %1487 = vmatpush2.bf16.msra.mxu0 0
      %1488 = vmatprep.subr.bf16.mxu0 0
      %1489 = vmatpush2.bf16.msra.mxu0 0
      %1490 = vmatprep.subr.bf16.mxu0 0
      %1491 = vmatpush2.bf16.msra.mxu0 0
      %1492 = vmatprep.subr.bf16.mxu0 0
      %1493 = vmatpush2.bf16.msra.mxu0 %v1462
      %1494 = vmatprep.subr.bf16.mxu0 0
      %1495 = vmatpush2.bf16.msra.mxu0 %v1459
      %1496 = vmatprep.mubr.bf16.mxu0 %v383
      %1497 = vmatmul.mubr.bf16.gmra.mxu0 %v375
      %v1498 = vpop.f32.mrf.mxu0
      %v1499 = vadd.f32 %v346, %v1498
      %v1500 = vpop.f32.mrf.mxu0
      %v1501 = vpop.f32.mrf.mxu0
      %v1502 = vadd.f32 %v351, %v1501
      %v1503 = vpop.f32.mrf.mxu0
      %1504 = vmatprep.mubr.bf16.mxu0 %v386
      %1505 = vmatmul.mubr.bf16.gmra.mxu0 %v377
      %v1506 = vpop.f32.mrf.mxu0
      %v1507 = vadd.f32 %v356, %v1506
      %v1508 = vpop.f32.mrf.mxu0
      %v1509 = vpop.f32.mrf.mxu0
      %v1510 = vadd.f32 %v361, %v1509
      %v1511 = vpop.f32.mrf.mxu0
      %1512 = vdwg.mxu0
      %v1513 = vtanh.pop %v1499
      %v1514 = vtanh.pop %v1502
      %v1515 = vtanh.pop %v1507
      %v1516 = vtanh.pop %v1510
      %s1517 = scalar_lea.vmem %s194, 224
      %1518 = vst.msk [vmem:[%s1517] sm:$0xff] %vm446, %v1513
      %1519 = vst.msk [vmem:[%s1517 + $0x8] sm:$0xff] %vm446, %v1514
      %1520 = vst.msk [vmem:[%s1517 + $0x10] sm:$0xff] %vm446, %v1515
      %1521 = vst.msk [vmem:[%s1517 + $0x18] sm:$0xff] %vm446, %v1516
      %s1522 = smul.u32 8, %s19
      %p1523 = scmp.lt.s32.totalorder %s18, 1
      %s1524 = scalar_select %p1523, %s18, 1
      %p1525 = scmp.lt.s32.totalorder %s1522, 7
      %s1526 = scalar_select %p1525, %s1522, 7
      %s1527 = smul.addr %s1526, 4
      %s1528 = smul.addr %s1524, 32
      %s1529 = sadd.s32 %s1527, %s1528
      %s1530 = smul.addr %s1529, 8
      %s1531 = scalar_lea.vmem %s3, %s1530
      // Predicated region
      $region33: #{model_tanh_forward.1} parent=31 // pred_check
        %p1532 = pneg %p114
      $region34: #{model_tanh_forward.1} parent=31 // pred_check_branch
        %1534 = sbr.rel (%p1532) target = $region36
      $region35: #{model_tanh_forward.1} parent=31 // pred_region
        %s1535 = smul.u32 8, %s19
      $region36: #{model_tanh_forward.1} parent=31 // pred_fallthru
        _
    $region32: #{model_tanh_forward.1} parent=5 // pred_fallthru
      _
    %p1536 = scmp.le.s32.totalorder 2, %s9
    // Predicated region
    $region37: #{model_tanh_forward.1} parent=5 // pred_check
      %p1537 = pneg %p1536
    $region38: #{model_tanh_forward.1} parent=5 // pred_check_branch
      %1539 = sbr.rel (%p1537) target = $region40
    $region39: #{model_tanh_forward.1} parent=5 // pred_region
      %s1540 = ssub.s32 %s9, 2
      // Predicated region
      $region41: #{model_tanh_forward.1} parent=39 // pred_check
        %p1541 = pneg %p120
      $region42: #{model_tanh_forward.1} parent=39 // pred_check_branch
        %1543 = sbr.rel (%p1541) target = $region44
      $region43: #{model_tanh_forward.1} parent=39 // pred_region
        %s1544 = smul.u32 8, %s21
        %p1545 = scmp.lt.s32.totalorder %s20, 1
        %s1546 = scalar_select %p1545, %s20, 1
        %p1547 = scmp.lt.s32.totalorder %s1544, 7
        %s1548 = scalar_select %p1547, %s1544, 7
        %s1549 = smul.addr %s1548, 4
        %s1550 = smul.addr %s1546, 32
        %s1551 = sadd.s32 %s1549, %s1550
        %s1552 = smul.addr %s1551, 8
        %s1553 = scalar_lea.vmem %s3, %s1552
      $region44: #{model_tanh_forward.1} parent=39 // pred_fallthru
        _
    $region40: #{model_tanh_forward.1} parent=5 // pred_fallthru
      _
  $region6: #{model_tanh_forward.1} parent=0 // loop_footer
    %s13 = sadd.s32 1, %s9
  $region7: #{model_tanh_forward.1} parent=0 // loop_footer_branch
    %8 = sbr.rel target = $region3
  $region8: #{model_tanh_forward.1} parent=0 // loop_exit
    _

</llo_original>
